<compile_context>
chip_gen: v7x
topology: tpu7x:2x2x1
jax: 0.10.0
libtpu: 0.0.40
codegen_flags: <defaults>
</compile_context>

<pallas_src>
import functools

import jax
import jax.numpy as jnp
from jax.experimental import pallas as pl
from jax.experimental.pallas import tpu as pltpu


def gru_encoder_kernel(x_ref, wih_ref, whh_ref, bi_ref, bhn_ref, h0_ref,
                       out_ref, gir_ref, giz_ref, gin_ref, *, unroll):
    """Single-layer unidirectional GRU over the full (padded) batch.

    x_ref:   [s*bp, d]   flattened seq-major input (batch padded to bp, 8|bp)
    wih_ref: [3, d, h]   per-gate input weights (r, z, n), pre-transposed
    whh_ref: [3, h, h]   per-gate hidden weights (r, z, n), pre-transposed
    bi_ref:  [3, 1, h]   input-side biases; b_hr / b_hz already folded in
    bhn_ref: [1, h]      hidden-side bias of the n gate (stays inside r*(.))
    h0_ref:  [bp, h]     initial hidden state
    out_ref: [s*bp, h]   all hidden states (final hidden = last bp rows)
    gi*_ref: [s*bp, h]   VMEM scratch: per-gate input projections
    """
    bp, h = h0_ref.shape
    seq_len = x_ref.shape[0] // bp

    # Phase 1: input-side projections for ALL timesteps — one MXU matmul per
    # gate, off the serial recurrence chain.  Per-gate slabs keep the
    # recurrence free of sub-128-lane gate slicing.
    x = x_ref[...]
    gir_ref[...] = (jnp.dot(x, wih_ref[0], preferred_element_type=jnp.float32)
                    + bi_ref[0])
    giz_ref[...] = (jnp.dot(x, wih_ref[1], preferred_element_type=jnp.float32)
                    + bi_ref[1])
    gin_ref[...] = (jnp.dot(x, wih_ref[2], preferred_element_type=jnp.float32)
                    + bi_ref[2])

    # Loop-invariant loads / broadcasts, hoisted once (JAX does not CSE
    # broadcast_in_dim inside an unrolled loop body).
    whh_r = whh_ref[0]
    whh_z = whh_ref[1]
    whh_n = whh_ref[2]
    bhn = jnp.broadcast_to(bhn_ref[...], (bp, h))

    def step(t, h_prev):
        # bp is a multiple of 8, so each timestep slab is one aligned sublane
        # group: no partial read-modify-write stores on the serial chain.
        row = pl.multiple_of(t * bp, 8)
        sl = pl.ds(row, bp)
        gh_r = jnp.dot(h_prev, whh_r, preferred_element_type=jnp.float32)
        gh_z = jnp.dot(h_prev, whh_z, preferred_element_type=jnp.float32)
        gh_n = jnp.dot(h_prev, whh_n, preferred_element_type=jnp.float32)
        r = jax.nn.sigmoid(gir_ref[sl, :] + gh_r)
        z = jax.nn.sigmoid(giz_ref[sl, :] + gh_z)
        n = jnp.tanh(gin_ref[sl, :] + r * (gh_n + bhn))
        h_new = n + z * (h_prev - n)        # == (1-z)*n + z*h, one op fewer
        out_ref[sl, :] = h_new.astype(out_ref.dtype)
        return h_new

    jax.lax.fori_loop(0, seq_len, step, h0_ref[...].astype(jnp.float32),
                      unroll=unroll)


def encoder_rnn_forward(input_seqs, input_lengths, w_ih, w_hh, b_ih, b_hh,
                        hidden=None, *, use_bf16_matmul=False):
    """input_seqs: [s, b, input_size] (seq-major, already embedded).
    Weights in PyTorch nn.GRU layout: w_ih [3h, input_size], w_hh [3h, h],
    b_ih / b_hh [3h] (gate order r, z, n).
    Returns (outputs [s, b, h], hidden [1, b, h])."""
    del input_lengths  # the PyTorch forward never packs, so it is unused
    s, b, d = input_seqs.shape
    h = w_hh.shape[1]
    bp = ((b + 7) // 8) * 8                  # sublane-aligned batch

    mm_dtype = jnp.bfloat16 if use_bf16_matmul else jnp.float32

    # Pad the batch to a multiple of 8; padded rows compute finite garbage
    # from zero inputs / zero h0 and are sliced off below.
    x3 = input_seqs.astype(mm_dtype)
    if bp != b:
        x3 = jnp.pad(x3, ((0, 0), (0, bp - b), (0, 0)))
    x2d = x3.reshape(s * bp, d)              # free, contiguous reshape

    # PyTorch nn.GRU layout -> per-gate, pre-transposed stacks (one-time).
    wih3 = jnp.transpose(w_ih.reshape(3, h, d), (0, 2, 1)).astype(mm_dtype)
    whh3 = jnp.transpose(w_hh.reshape(3, h, h), (0, 2, 1)).astype(jnp.float32)
    bi = b_ih.reshape(3, h).astype(jnp.float32)
    bh = b_hh.reshape(3, h).astype(jnp.float32)
    # Fold b_hr / b_hz into the input-side projection biases (b_hn cannot be
    # folded: it sits inside the r * (.) term of the n gate).
    bi3 = jnp.stack([bi[0] + bh[0], bi[1] + bh[1], bi[2]])[:, None, :]
    bhn = bh[2].reshape(1, h)

    if hidden is None:
        h0 = jnp.zeros((bp, h), jnp.float32)
    else:
        h0 = hidden.reshape(b, h).astype(jnp.float32)
        if bp != b:
            h0 = jnp.pad(h0, ((0, bp - b), (0, 0)))

    flops = 2 * s * bp * 3 * h * (d + h) + 12 * s * bp * h
    bytes_accessed = 4 * (s * bp * (d + h) + 3 * h * (d + h) + 4 * h + bp * h)
    vmem_spec = pl.BlockSpec(memory_space=pltpu.MemorySpace.VMEM)

    out2d = pl.pallas_call(
        functools.partial(gru_encoder_kernel, unroll=min(max(s, 1), 8)),
        out_shape=jax.ShapeDtypeStruct((s * bp, h), jnp.float32),
        in_specs=[vmem_spec] * 6,
        out_specs=vmem_spec,
        scratch_shapes=[pltpu.VMEM((s * bp, h), jnp.float32)
                        for _ in range(3)],
        compiler_params=pltpu.CompilerParams(
            # ~0.1 MiB live at these shapes; raise the scoped-VMEM ceiling so
            # the same kernel keeps compiling as s/b/h scale.
            vmem_limit_bytes=32 * 1024 * 1024),
        cost_estimate=pl.CostEstimate(
            flops=flops,
            transcendentals=3 * s * bp * h,
            bytes_accessed=bytes_accessed),
    )(x2d, wih3, whh3, bi3, bhn, h0)

    outputs = out2d.reshape(s, bp, h)[:, :b, :]
    # Final hidden of a 1-layer unidirectional GRU is just the last output
    # timestep (saves a second kernel output / HBM writeback).
    final_hidden = outputs[-1][None]
    return outputs, final_hidden


def _reference_gru(input_seqs, w_ih, w_hh, b_ih, b_hh, h0):
    """Pure-JAX single-layer GRU, PyTorch gate order (r, z, n)."""
    hsz = w_hh.shape[1]

    def step(h_prev, x_t):
        gi = x_t @ w_ih.T + b_ih
        gh = h_prev @ w_hh.T + b_hh
        r = jax.nn.sigmoid(gi[:, :hsz] + gh[:, :hsz])
        z = jax.nn.sigmoid(gi[:, hsz:2 * hsz] + gh[:, hsz:2 * hsz])
        n = jnp.tanh(gi[:, 2 * hsz:] + r * gh[:, 2 * hsz:])
        h_new = (1.0 - z) * n + z * h_prev
        return h_new, h_new

    h_last, outs = jax.lax.scan(step, h0, input_seqs)
    return outs, h_last[None]


if __name__ == "__main__":
    key = jax.random.PRNGKey(0)
    k1, k2, k3, k4, k5 = jax.random.split(key, 5)

    S, B, D, H = 8, 2, 16, 32   # seq len, batch, input_size, hidden_size

    input_seqs = jax.random.normal(k1, (S, B, D), dtype=jnp.float32)
    input_lengths = [S] * B     # API parity only; unused by the forward

    # nn.GRU parameters, PyTorch layout, deterministic uniform init.
    bound = 1.0 / (H ** 0.5)
    w_ih = jax.random.uniform(k2, (3 * H, D), minval=-bound, maxval=bound,
                              dtype=jnp.float32)
    w_hh = jax.random.uniform(k3, (3 * H, H), minval=-bound, maxval=bound,
                              dtype=jnp.float32)
    b_ih = jax.random.uniform(k4, (3 * H,), minval=-bound, maxval=bound,
                              dtype=jnp.float32)
    b_hh = jax.random.uniform(k5, (3 * H,), minval=-bound, maxval=bound,
                              dtype=jnp.float32)

    outputs, hidden = encoder_rnn_forward(input_seqs, input_lengths,
                                          w_ih, w_hh, b_ih, b_hh)
    outputs, hidden = jax.block_until_ready((outputs, hidden))

    ref_out, ref_hid = _reference_gru(input_seqs, w_ih, w_hh, b_ih, b_hh,
                                      jnp.zeros((B, H), jnp.float32))
    assert outputs.shape == (S, B, H)
    assert hidden.shape == (1, B, H)
    assert jnp.allclose(outputs, ref_out, atol=1e-5, rtol=1e-5)
    assert jnp.allclose(hidden, ref_hid, atol=1e-5, rtol=1e-5)

    # bf16 MXU-operand path for the big input projection (v6e/v7x lever);
    # f32 accumulation + f32 gate math, so only a loose tolerance is needed.
    out_bf16, hid_bf16 = encoder_rnn_forward(input_seqs, input_lengths,
                                             w_ih, w_hh, b_ih, b_hh,
                                             use_bf16_matmul=True)
    out_bf16, hid_bf16 = jax.block_until_ready((out_bf16, hid_bf16))
    assert jnp.allclose(out_bf16, ref_out, atol=5e-2, rtol=5e-2)
    assert jnp.allclose(hid_bf16, ref_hid, atol=5e-2, rtol=5e-2)

    print("KERNEL_OK")
</pallas_src>

<mosaic_0001>
module attributes {stable_mosaic.version = 11 : i64} {
  func.func @gru_encoder_kernel(%arg0: memref<64x16xf32, #tpu.memory_space<vmem>>, %arg1: memref<3x16x32xf32, #tpu.memory_space<vmem>>, %arg2: memref<3x32x32xf32, #tpu.memory_space<vmem>>, %arg3: memref<3x1x32xf32, #tpu.memory_space<vmem>>, %arg4: memref<1x32xf32, #tpu.memory_space<vmem>>, %arg5: memref<8x32xf32, #tpu.memory_space<vmem>>, %arg6: memref<64x32xf32, #tpu.memory_space<vmem>>, %arg7: memref<64x32xf32, #tpu.memory_space<vmem>>, %arg8: memref<64x32xf32, #tpu.memory_space<vmem>>, %arg9: memref<64x32xf32, #tpu.memory_space<vmem>>) attributes {dimension_semantics = [], scalar_prefetch = 0 : i64, scratch_operands = 3 : i64, tpu.core_type = #tpu.core_type<tc>} {
    %c0 = arith.constant 0 : index
    %c0_0 = arith.constant 0 : index
    %0 = vector.load %arg0[%c0, %c0_0] : memref<64x16xf32, #tpu.memory_space<vmem>>, vector<64x16xf32>
    %c0_1 = arith.constant 0 : index
    %c0_2 = arith.constant 0 : index
    %c0_3 = arith.constant 0 : index
    %1 = vector.load %arg1[%c0_1, %c0_2, %c0_3] : memref<3x16x32xf32, #tpu.memory_space<vmem>>, vector<1x16x32xf32>
    %2 = vector.shape_cast %1 : vector<1x16x32xf32> to vector<16x32xf32>
    %cst = arith.constant dense<0.000000e+00> : vector<64x32xf32>
    %3 = tpu.matmul %0, %2, %cst {dimension_numbers = #tpu.dot_dimension_numbers<[1], [0], [0], [1], [0, 0, 1, 1], [], []>} : vector<64x16xf32>, vector<16x32xf32>, vector<64x32xf32> -> vector<64x32xf32>
    %c0_4 = arith.constant 0 : index
    %c0_5 = arith.constant 0 : index
    %c0_6 = arith.constant 0 : index
    %4 = vector.load %arg3[%c0_4, %c0_5, %c0_6] : memref<3x1x32xf32, #tpu.memory_space<vmem>>, vector<1x1x32xf32>
    %5 = vector.shape_cast %4 : vector<1x1x32xf32> to vector<1x32xf32>
    %6 = vector.broadcast %5 : vector<1x32xf32> to vector<64x32xf32>
    %7 = arith.addf %3, %6 : vector<64x32xf32>
    %c0_7 = arith.constant 0 : index
    %c0_8 = arith.constant 0 : index
    %8 = vector.load %arg7[%c0_7, %c0_8] : memref<64x32xf32, #tpu.memory_space<vmem>>, vector<64x32xf32>
    tpu.vector_store %arg7[%c0_7, %c0_8], %7 {strides = array<i32>} : memref<64x32xf32, #tpu.memory_space<vmem>>, vector<64x32xf32>,
    %c1 = arith.constant 1 : index
    %c0_9 = arith.constant 0 : index
    %c0_10 = arith.constant 0 : index
    %9 = vector.load %arg1[%c1, %c0_9, %c0_10] : memref<3x16x32xf32, #tpu.memory_space<vmem>>, vector<1x16x32xf32>
    %10 = vector.shape_cast %9 : vector<1x16x32xf32> to vector<16x32xf32>
    %cst_11 = arith.constant dense<0.000000e+00> : vector<64x32xf32>
    %11 = tpu.matmul %0, %10, %cst_11 {dimension_numbers = #tpu.dot_dimension_numbers<[1], [0], [0], [1], [0, 0, 1, 1], [], []>} : vector<64x16xf32>, vector<16x32xf32>, vector<64x32xf32> -> vector<64x32xf32>
    %c1_12 = arith.constant 1 : index
    %c0_13 = arith.constant 0 : index
    %c0_14 = arith.constant 0 : index
    %12 = vector.load %arg3[%c1_12, %c0_13, %c0_14] : memref<3x1x32xf32, #tpu.memory_space<vmem>>, vector<1x1x32xf32>
    %13 = vector.shape_cast %12 : vector<1x1x32xf32> to vector<1x32xf32>
    %14 = vector.broadcast %13 : vector<1x32xf32> to vector<64x32xf32>
    %15 = arith.addf %11, %14 : vector<64x32xf32>
    %c0_15 = arith.constant 0 : index
    %c0_16 = arith.constant 0 : index
    %16 = vector.load %arg8[%c0_15, %c0_16] : memref<64x32xf32, #tpu.memory_space<vmem>>, vector<64x32xf32>
    tpu.vector_store %arg8[%c0_15, %c0_16], %15 {strides = array<i32>} : memref<64x32xf32, #tpu.memory_space<vmem>>, vector<64x32xf32>,
    %c2 = arith.constant 2 : index
    %c0_17 = arith.constant 0 : index
    %c0_18 = arith.constant 0 : index
    %17 = vector.load %arg1[%c2, %c0_17, %c0_18] : memref<3x16x32xf32, #tpu.memory_space<vmem>>, vector<1x16x32xf32>
    %18 = vector.shape_cast %17 : vector<1x16x32xf32> to vector<16x32xf32>
    %cst_19 = arith.constant dense<0.000000e+00> : vector<64x32xf32>
    %19 = tpu.matmul %0, %18, %cst_19 {dimension_numbers = #tpu.dot_dimension_numbers<[1], [0], [0], [1], [0, 0, 1, 1], [], []>} : vector<64x16xf32>, vector<16x32xf32>, vector<64x32xf32> -> vector<64x32xf32>
    %c2_20 = arith.constant 2 : index
    %c0_21 = arith.constant 0 : index
    %c0_22 = arith.constant 0 : index
    %20 = vector.load %arg3[%c2_20, %c0_21, %c0_22] : memref<3x1x32xf32, #tpu.memory_space<vmem>>, vector<1x1x32xf32>
    %21 = vector.shape_cast %20 : vector<1x1x32xf32> to vector<1x32xf32>
    %22 = vector.broadcast %21 : vector<1x32xf32> to vector<64x32xf32>
    %23 = arith.addf %19, %22 : vector<64x32xf32>
    %c0_23 = arith.constant 0 : index
    %c0_24 = arith.constant 0 : index
    %24 = vector.load %arg9[%c0_23, %c0_24] : memref<64x32xf32, #tpu.memory_space<vmem>>, vector<64x32xf32>
    tpu.vector_store %arg9[%c0_23, %c0_24], %23 {strides = array<i32>} : memref<64x32xf32, #tpu.memory_space<vmem>>, vector<64x32xf32>,
    %c0_25 = arith.constant 0 : index
    %c0_26 = arith.constant 0 : index
    %c0_27 = arith.constant 0 : index
    %25 = vector.load %arg2[%c0_25, %c0_26, %c0_27] : memref<3x32x32xf32, #tpu.memory_space<vmem>>, vector<1x32x32xf32>
    %26 = vector.shape_cast %25 : vector<1x32x32xf32> to vector<32x32xf32>
    %c1_28 = arith.constant 1 : index
    %c0_29 = arith.constant 0 : index
    %c0_30 = arith.constant 0 : index
    %27 = vector.load %arg2[%c1_28, %c0_29, %c0_30] : memref<3x32x32xf32, #tpu.memory_space<vmem>>, vector<1x32x32xf32>
    %28 = vector.shape_cast %27 : vector<1x32x32xf32> to vector<32x32xf32>
    %c2_31 = arith.constant 2 : index
    %c0_32 = arith.constant 0 : index
    %c0_33 = arith.constant 0 : index
    %29 = vector.load %arg2[%c2_31, %c0_32, %c0_33] : memref<3x32x32xf32, #tpu.memory_space<vmem>>, vector<1x32x32xf32>
    %30 = vector.shape_cast %29 : vector<1x32x32xf32> to vector<32x32xf32>
    %c0_34 = arith.constant 0 : index
    %c0_35 = arith.constant 0 : index
    %31 = vector.load %arg4[%c0_34, %c0_35] : memref<1x32xf32, #tpu.memory_space<vmem>>, vector<1x32xf32>
    %32 = vector.shape_cast %31 : vector<1x32xf32> to vector<1x32xf32>
    %33 = vector.broadcast %32 : vector<1x32xf32> to vector<8x32xf32>
    %c0_36 = arith.constant 0 : index
    %c0_37 = arith.constant 0 : index
    %34 = vector.load %arg5[%c0_36, %c0_37] : memref<8x32xf32, #tpu.memory_space<vmem>>, vector<8x32xf32>
    %c0_i32 = arith.constant 0 : i32
    %c8_i32 = arith.constant 8 : i32
    %35 = arith.muli %c0_i32, %c8_i32 : i32
    %36 = tpu.assume_multiple %35, 8 : i32
    %cst_38 = arith.constant dense<0.000000e+00> : vector<8x32xf32>
    %37 = tpu.matmul %34, %26, %cst_38 {dimension_numbers = #tpu.dot_dimension_numbers<[1], [0], [0], [1], [0, 0, 1, 1], [], []>} : vector<8x32xf32>, vector<32x32xf32>, vector<8x32xf32> -> vector<8x32xf32>
    %cst_39 = arith.constant dense<0.000000e+00> : vector<8x32xf32>
    %38 = tpu.matmul %34, %28, %cst_39 {dimension_numbers = #tpu.dot_dimension_numbers<[1], [0], [0], [1], [0, 0, 1, 1], [], []>} : vector<8x32xf32>, vector<32x32xf32>, vector<8x32xf32> -> vector<8x32xf32>
    %cst_40 = arith.constant dense<0.000000e+00> : vector<8x32xf32>
    %39 = tpu.matmul %34, %30, %cst_40 {dimension_numbers = #tpu.dot_dimension_numbers<[1], [0], [0], [1], [0, 0, 1, 1], [], []>} : vector<8x32xf32>, vector<32x32xf32>, vector<8x32xf32> -> vector<8x32xf32>
    %40 = arith.index_cast %36 : i32 to index
    %c0_41 = arith.constant 0 : index
    %41 = vector.load %arg7[%40, %c0_41] : memref<64x32xf32, #tpu.memory_space<vmem>>, vector<8x32xf32>
    %42 = arith.addf %41, %37 : vector<8x32xf32>
    %43 = arith.negf %42 : vector<8x32xf32>
    %44 = math.exp %43 : vector<8x32xf32>
    %cst_42 = arith.constant 1.000000e+00 : f32
    %45 = vector.broadcast %cst_42 : f32 to vector<8x32xf32>
    %46 = arith.addf %45, %44 : vector<8x32xf32>
    %47 = arith.divf %45, %46 : vector<8x32xf32>
    %48 = arith.index_cast %36 : i32 to index
    %c0_43 = arith.constant 0 : index
    %49 = vector.load %arg8[%48, %c0_43] : memref<64x32xf32, #tpu.memory_space<vmem>>, vector<8x32xf32>
    %50 = arith.addf %49, %38 : vector<8x32xf32>
    %51 = arith.negf %50 : vector<8x32xf32>
    %52 = math.exp %51 : vector<8x32xf32>
    %cst_44 = arith.constant 1.000000e+00 : f32
    %53 = vector.broadcast %cst_44 : f32 to vector<8x32xf32>
    %54 = arith.addf %53, %52 : vector<8x32xf32>
    %55 = arith.divf %53, %54 : vector<8x32xf32>
    %56 = arith.index_cast %36 : i32 to index
    %c0_45 = arith.constant 0 : index
    %57 = vector.load %arg9[%56, %c0_45] : memref<64x32xf32, #tpu.memory_space<vmem>>, vector<8x32xf32>
    %58 = arith.addf %39, %33 : vector<8x32xf32>
    %59 = arith.mulf %47, %58 : vector<8x32xf32>
    %60 = arith.addf %57, %59 : vector<8x32xf32>
    %61 = math.tanh %60 : vector<8x32xf32>
    %62 = arith.subf %34, %61 : vector<8x32xf32>
    %63 = arith.mulf %55, %62 : vector<8x32xf32>
    %64 = arith.addf %61, %63 : vector<8x32xf32>
    %65 = arith.index_cast %36 : i32 to index
    %c0_46 = arith.constant 0 : index
    %66 = vector.load %arg6[%65, %c0_46] : memref<64x32xf32, #tpu.memory_space<vmem>>, vector<8x32xf32>
    tpu.vector_store %arg6[%65, %c0_46], %64 {strides = array<i32>} : memref<64x32xf32, #tpu.memory_space<vmem>>, vector<8x32xf32>,
    %c1_i32 = arith.constant 1 : i32
    %c8_i32_47 = arith.constant 8 : i32
    %67 = arith.muli %c1_i32, %c8_i32_47 : i32
    %68 = tpu.assume_multiple %67, 8 : i32
    %cst_48 = arith.constant dense<0.000000e+00> : vector<8x32xf32>
    %69 = tpu.matmul %64, %26, %cst_48 {dimension_numbers = #tpu.dot_dimension_numbers<[1], [0], [0], [1], [0, 0, 1, 1], [], []>} : vector<8x32xf32>, vector<32x32xf32>, vector<8x32xf32> -> vector<8x32xf32>
    %cst_49 = arith.constant dense<0.000000e+00> : vector<8x32xf32>
    %70 = tpu.matmul %64, %28, %cst_49 {dimension_numbers = #tpu.dot_dimension_numbers<[1], [0], [0], [1], [0, 0, 1, 1], [], []>} : vector<8x32xf32>, vector<32x32xf32>, vector<8x32xf32> -> vector<8x32xf32>
    %cst_50 = arith.constant dense<0.000000e+00> : vector<8x32xf32>
    %71 = tpu.matmul %64, %30, %cst_50 {dimension_numbers = #tpu.dot_dimension_numbers<[1], [0], [0], [1], [0, 0, 1, 1], [], []>} : vector<8x32xf32>, vector<32x32xf32>, vector<8x32xf32> -> vector<8x32xf32>
    %72 = arith.index_cast %68 : i32 to index
    %c0_51 = arith.constant 0 : index
    %73 = vector.load %arg7[%72, %c0_51] : memref<64x32xf32, #tpu.memory_space<vmem>>, vector<8x32xf32>
    %74 = arith.addf %73, %69 : vector<8x32xf32>
    %75 = arith.negf %74 : vector<8x32xf32>
    %76 = math.exp %75 : vector<8x32xf32>
    %cst_52 = arith.constant 1.000000e+00 : f32
    %77 = vector.broadcast %cst_52 : f32 to vector<8x32xf32>
    %78 = arith.addf %77, %76 : vector<8x32xf32>
    %79 = arith.divf %77, %78 : vector<8x32xf32>
    %80 = arith.index_cast %68 : i32 to index
    %c0_53 = arith.constant 0 : index
    %81 = vector.load %arg8[%80, %c0_53] : memref<64x32xf32, #tpu.memory_space<vmem>>, vector<8x32xf32>
    %82 = arith.addf %81, %70 : vector<8x32xf32>
    %83 = arith.negf %82 : vector<8x32xf32>
    %84 = math.exp %83 : vector<8x32xf32>
    %cst_54 = arith.constant 1.000000e+00 : f32
    %85 = vector.broadcast %cst_54 : f32 to vector<8x32xf32>
    %86 = arith.addf %85, %84 : vector<8x32xf32>
    %87 = arith.divf %85, %86 : vector<8x32xf32>
    %88 = arith.index_cast %68 : i32 to index
    %c0_55 = arith.constant 0 : index
    %89 = vector.load %arg9[%88, %c0_55] : memref<64x32xf32, #tpu.memory_space<vmem>>, vector<8x32xf32>
    %90 = arith.addf %71, %33 : vector<8x32xf32>
    %91 = arith.mulf %79, %90 : vector<8x32xf32>
    %92 = arith.addf %89, %91 : vector<8x32xf32>
    %93 = math.tanh %92 : vector<8x32xf32>
    %94 = arith.subf %64, %93 : vector<8x32xf32>
    %95 = arith.mulf %87, %94 : vector<8x32xf32>
    %96 = arith.addf %93, %95 : vector<8x32xf32>
    %97 = arith.index_cast %68 : i32 to index
    %c0_56 = arith.constant 0 : index
    %98 = vector.load %arg6[%97, %c0_56] : memref<64x32xf32, #tpu.memory_space<vmem>>, vector<8x32xf32>
    tpu.vector_store %arg6[%97, %c0_56], %96 {strides = array<i32>} : memref<64x32xf32, #tpu.memory_space<vmem>>, vector<8x32xf32>,
    %c2_i32 = arith.constant 2 : i32
    %c8_i32_57 = arith.constant 8 : i32
    %99 = arith.muli %c2_i32, %c8_i32_57 : i32
    %100 = tpu.assume_multiple %99, 8 : i32
    %cst_58 = arith.constant dense<0.000000e+00> : vector<8x32xf32>
    %101 = tpu.matmul %96, %26, %cst_58 {dimension_numbers = #tpu.dot_dimension_numbers<[1], [0], [0], [1], [0, 0, 1, 1], [], []>} : vector<8x32xf32>, vector<32x32xf32>, vector<8x32xf32> -> vector<8x32xf32>
    %cst_59 = arith.constant dense<0.000000e+00> : vector<8x32xf32>
    %102 = tpu.matmul %96, %28, %cst_59 {dimension_numbers = #tpu.dot_dimension_numbers<[1], [0], [0], [1], [0, 0, 1, 1], [], []>} : vector<8x32xf32>, vector<32x32xf32>, vector<8x32xf32> -> vector<8x32xf32>
    %cst_60 = arith.constant dense<0.000000e+00> : vector<8x32xf32>
    %103 = tpu.matmul %96, %30, %cst_60 {dimension_numbers = #tpu.dot_dimension_numbers<[1], [0], [0], [1], [0, 0, 1, 1], [], []>} : vector<8x32xf32>, vector<32x32xf32>, vector<8x32xf32> -> vector<8x32xf32>
    %104 = arith.index_cast %100 : i32 to index
    %c0_61 = arith.constant 0 : index
    %105 = vector.load %arg7[%104, %c0_61] : memref<64x32xf32, #tpu.memory_space<vmem>>, vector<8x32xf32>
    %106 = arith.addf %105, %101 : vector<8x32xf32>
    %107 = arith.negf %106 : vector<8x32xf32>
    %108 = math.exp %107 : vector<8x32xf32>
    %cst_62 = arith.constant 1.000000e+00 : f32
    %109 = vector.broadcast %cst_62 : f32 to vector<8x32xf32>
    %110 = arith.addf %109, %108 : vector<8x32xf32>
    %111 = arith.divf %109, %110 : vector<8x32xf32>
    %112 = arith.index_cast %100 : i32 to index
    %c0_63 = arith.constant 0 : index
    %113 = vector.load %arg8[%112, %c0_63] : memref<64x32xf32, #tpu.memory_space<vmem>>, vector<8x32xf32>
    %114 = arith.addf %113, %102 : vector<8x32xf32>
    %115 = arith.negf %114 : vector<8x32xf32>
    %116 = math.exp %115 : vector<8x32xf32>
    %cst_64 = arith.constant 1.000000e+00 : f32
    %117 = vector.broadcast %cst_64 : f32 to vector<8x32xf32>
    %118 = arith.addf %117, %116 : vector<8x32xf32>
    %119 = arith.divf %117, %118 : vector<8x32xf32>
    %120 = arith.index_cast %100 : i32 to index
    %c0_65 = arith.constant 0 : index
    %121 = vector.load %arg9[%120, %c0_65] : memref<64x32xf32, #tpu.memory_space<vmem>>, vector<8x32xf32>
    %122 = arith.addf %103, %33 : vector<8x32xf32>
    %123 = arith.mulf %111, %122 : vector<8x32xf32>
    %124 = arith.addf %121, %123 : vector<8x32xf32>
    %125 = math.tanh %124 : vector<8x32xf32>
    %126 = arith.subf %96, %125 : vector<8x32xf32>
    %127 = arith.mulf %119, %126 : vector<8x32xf32>
    %128 = arith.addf %125, %127 : vector<8x32xf32>
    %129 = arith.index_cast %100 : i32 to index
    %c0_66 = arith.constant 0 : index
    %130 = vector.load %arg6[%129, %c0_66] : memref<64x32xf32, #tpu.memory_space<vmem>>, vector<8x32xf32>
    tpu.vector_store %arg6[%129, %c0_66], %128 {strides = array<i32>} : memref<64x32xf32, #tpu.memory_space<vmem>>, vector<8x32xf32>,
    %c3_i32 = arith.constant 3 : i32
    %c8_i32_67 = arith.constant 8 : i32
    %131 = arith.muli %c3_i32, %c8_i32_67 : i32
    %132 = tpu.assume_multiple %131, 8 : i32
    %cst_68 = arith.constant dense<0.000000e+00> : vector<8x32xf32>
    %133 = tpu.matmul %128, %26, %cst_68 {dimension_numbers = #tpu.dot_dimension_numbers<[1], [0], [0], [1], [0, 0, 1, 1], [], []>} : vector<8x32xf32>, vector<32x32xf32>, vector<8x32xf32> -> vector<8x32xf32>
    %cst_69 = arith.constant dense<0.000000e+00> : vector<8x32xf32>
    %134 = tpu.matmul %128, %28, %cst_69 {dimension_numbers = #tpu.dot_dimension_numbers<[1], [0], [0], [1], [0, 0, 1, 1], [], []>} : vector<8x32xf32>, vector<32x32xf32>, vector<8x32xf32> -> vector<8x32xf32>
    %cst_70 = arith.constant dense<0.000000e+00> : vector<8x32xf32>
    %135 = tpu.matmul %128, %30, %cst_70 {dimension_numbers = #tpu.dot_dimension_numbers<[1], [0], [0], [1], [0, 0, 1, 1], [], []>} : vector<8x32xf32>, vector<32x32xf32>, vector<8x32xf32> -> vector<8x32xf32>
    %136 = arith.index_cast %132 : i32 to index
    %c0_71 = arith.constant 0 : index
    %137 = vector.load %arg7[%136, %c0_71] : memref<64x32xf32, #tpu.memory_space<vmem>>, vector<8x32xf32>
    %138 = arith.addf %137, %133 : vector<8x32xf32>
    %139 = arith.negf %138 : vector<8x32xf32>
    %140 = math.exp %139 : vector<8x32xf32>
    %cst_72 = arith.constant 1.000000e+00 : f32
    %141 = vector.broadcast %cst_72 : f32 to vector<8x32xf32>
    %142 = arith.addf %141, %140 : vector<8x32xf32>
    %143 = arith.divf %141, %142 : vector<8x32xf32>
    %144 = arith.index_cast %132 : i32 to index
    %c0_73 = arith.constant 0 : index
    %145 = vector.load %arg8[%144, %c0_73] : memref<64x32xf32, #tpu.memory_space<vmem>>, vector<8x32xf32>
    %146 = arith.addf %145, %134 : vector<8x32xf32>
    %147 = arith.negf %146 : vector<8x32xf32>
    %148 = math.exp %147 : vector<8x32xf32>
    %cst_74 = arith.constant 1.000000e+00 : f32
    %149 = vector.broadcast %cst_74 : f32 to vector<8x32xf32>
    %150 = arith.addf %149, %148 : vector<8x32xf32>
    %151 = arith.divf %149, %150 : vector<8x32xf32>
    %152 = arith.index_cast %132 : i32 to index
    %c0_75 = arith.constant 0 : index
    %153 = vector.load %arg9[%152, %c0_75] : memref<64x32xf32, #tpu.memory_space<vmem>>, vector<8x32xf32>
    %154 = arith.addf %135, %33 : vector<8x32xf32>
    %155 = arith.mulf %143, %154 : vector<8x32xf32>
    %156 = arith.addf %153, %155 : vector<8x32xf32>
    %157 = math.tanh %156 : vector<8x32xf32>
    %158 = arith.subf %128, %157 : vector<8x32xf32>
    %159 = arith.mulf %151, %158 : vector<8x32xf32>
    %160 = arith.addf %157, %159 : vector<8x32xf32>
    %161 = arith.index_cast %132 : i32 to index
    %c0_76 = arith.constant 0 : index
    %162 = vector.load %arg6[%161, %c0_76] : memref<64x32xf32, #tpu.memory_space<vmem>>, vector<8x32xf32>
    tpu.vector_store %arg6[%161, %c0_76], %160 {strides = array<i32>} : memref<64x32xf32, #tpu.memory_space<vmem>>, vector<8x32xf32>,
    %c4_i32 = arith.constant 4 : i32
    %c8_i32_77 = arith.constant 8 : i32
    %163 = arith.muli %c4_i32, %c8_i32_77 : i32
    %164 = tpu.assume_multiple %163, 8 : i32
    %cst_78 = arith.constant dense<0.000000e+00> : vector<8x32xf32>
    %165 = tpu.matmul %160, %26, %cst_78 {dimension_numbers = #tpu.dot_dimension_numbers<[1], [0], [0], [1], [0, 0, 1, 1], [], []>} : vector<8x32xf32>, vector<32x32xf32>, vector<8x32xf32> -> vector<8x32xf32>
    %cst_79 = arith.constant dense<0.000000e+00> : vector<8x32xf32>
    %166 = tpu.matmul %160, %28, %cst_79 {dimension_numbers = #tpu.dot_dimension_numbers<[1], [0], [0], [1], [0, 0, 1, 1], [], []>} : vector<8x32xf32>, vector<32x32xf32>, vector<8x32xf32> -> vector<8x32xf32>
    %cst_80 = arith.constant dense<0.000000e+00> : vector<8x32xf32>
    %167 = tpu.matmul %160, %30, %cst_80 {dimension_numbers = #tpu.dot_dimension_numbers<[1], [0], [0], [1], [0, 0, 1, 1], [], []>} : vector<8x32xf32>, vector<32x32xf32>, vector<8x32xf32> -> vector<8x32xf32>
    %168 = arith.index_cast %164 : i32 to index
    %c0_81 = arith.constant 0 : index
    %169 = vector.load %arg7[%168, %c0_81] : memref<64x32xf32, #tpu.memory_space<vmem>>, vector<8x32xf32>
    %170 = arith.addf %169, %165 : vector<8x32xf32>
    %171 = arith.negf %170 : vector<8x32xf32>
    %172 = math.exp %171 : vector<8x32xf32>
    %cst_82 = arith.constant 1.000000e+00 : f32
    %173 = vector.broadcast %cst_82 : f32 to vector<8x32xf32>
    %174 = arith.addf %173, %172 : vector<8x32xf32>
    %175 = arith.divf %173, %174 : vector<8x32xf32>
    %176 = arith.index_cast %164 : i32 to index
    %c0_83 = arith.constant 0 : index
    %177 = vector.load %arg8[%176, %c0_83] : memref<64x32xf32, #tpu.memory_space<vmem>>, vector<8x32xf32>
    %178 = arith.addf %177, %166 : vector<8x32xf32>
    %179 = arith.negf %178 : vector<8x32xf32>
    %180 = math.exp %179 : vector<8x32xf32>
    %cst_84 = arith.constant 1.000000e+00 : f32
    %181 = vector.broadcast %cst_84 : f32 to vector<8x32xf32>
    %182 = arith.addf %181, %180 : vector<8x32xf32>
    %183 = arith.divf %181, %182 : vector<8x32xf32>
    %184 = arith.index_cast %164 : i32 to index
    %c0_85 = arith.constant 0 : index
    %185 = vector.load %arg9[%184, %c0_85] : memref<64x32xf32, #tpu.memory_space<vmem>>, vector<8x32xf32>
    %186 = arith.addf %167, %33 : vector<8x32xf32>
    %187 = arith.mulf %175, %186 : vector<8x32xf32>
    %188 = arith.addf %185, %187 : vector<8x32xf32>
    %189 = math.tanh %188 : vector<8x32xf32>
    %190 = arith.subf %160, %189 : vector<8x32xf32>
    %191 = arith.mulf %183, %190 : vector<8x32xf32>
    %192 = arith.addf %189, %191 : vector<8x32xf32>
    %193 = arith.index_cast %164 : i32 to index
    %c0_86 = arith.constant 0 : index
    %194 = vector.load %arg6[%193, %c0_86] : memref<64x32xf32, #tpu.memory_space<vmem>>, vector<8x32xf32>
    tpu.vector_store %arg6[%193, %c0_86], %192 {strides = array<i32>} : memref<64x32xf32, #tpu.memory_space<vmem>>, vector<8x32xf32>,
    %c5_i32 = arith.constant 5 : i32
    %c8_i32_87 = arith.constant 8 : i32
    %195 = arith.muli %c5_i32, %c8_i32_87 : i32
    %196 = tpu.assume_multiple %195, 8 : i32
    %cst_88 = arith.constant dense<0.000000e+00> : vector<8x32xf32>
    %197 = tpu.matmul %192, %26, %cst_88 {dimension_numbers = #tpu.dot_dimension_numbers<[1], [0], [0], [1], [0, 0, 1, 1], [], []>} : vector<8x32xf32>, vector<32x32xf32>, vector<8x32xf32> -> vector<8x32xf32>
    %cst_89 = arith.constant dense<0.000000e+00> : vector<8x32xf32>
    %198 = tpu.matmul %192, %28, %cst_89 {dimension_numbers = #tpu.dot_dimension_numbers<[1], [0], [0], [1], [0, 0, 1, 1], [], []>} : vector<8x32xf32>, vector<32x32xf32>, vector<8x32xf32> -> vector<8x32xf32>
    %cst_90 = arith.constant dense<0.000000e+00> : vector<8x32xf32>
    %199 = tpu.matmul %192, %30, %cst_90 {dimension_numbers = #tpu.dot_dimension_numbers<[1], [0], [0], [1], [0, 0, 1, 1], [], []>} : vector<8x32xf32>, vector<32x32xf32>, vector<8x32xf32> -> vector<8x32xf32>
    %200 = arith.index_cast %196 : i32 to index
    %c0_91 = arith.constant 0 : index
    %201 = vector.load %arg7[%200, %c0_91] : memref<64x32xf32, #tpu.memory_space<vmem>>, vector<8x32xf32>
    %202 = arith.addf %201, %197 : vector<8x32xf32>
    %203 = arith.negf %202 : vector<8x32xf32>
    %204 = math.exp %203 : vector<8x32xf32>
    %cst_92 = arith.constant 1.000000e+00 : f32
    %205 = vector.broadcast %cst_92 : f32 to vector<8x32xf32>
    %206 = arith.addf %205, %204 : vector<8x32xf32>
    %207 = arith.divf %205, %206 : vector<8x32xf32>
    %208 = arith.index_cast %196 : i32 to index
    %c0_93 = arith.constant 0 : index
    %209 = vector.load %arg8[%208, %c0_93] : memref<64x32xf32, #tpu.memory_space<vmem>>, vector<8x32xf32>
    %210 = arith.addf %209, %198 : vector<8x32xf32>
    %211 = arith.negf %210 : vector<8x32xf32>
    %212 = math.exp %211 : vector<8x32xf32>
    %cst_94 = arith.constant 1.000000e+00 : f32
    %213 = vector.broadcast %cst_94 : f32 to vector<8x32xf32>
    %214 = arith.addf %213, %212 : vector<8x32xf32>
    %215 = arith.divf %213, %214 : vector<8x32xf32>
    %216 = arith.index_cast %196 : i32 to index
    %c0_95 = arith.constant 0 : index
    %217 = vector.load %arg9[%216, %c0_95] : memref<64x32xf32, #tpu.memory_space<vmem>>, vector<8x32xf32>
    %218 = arith.addf %199, %33 : vector<8x32xf32>
    %219 = arith.mulf %207, %218 : vector<8x32xf32>
    %220 = arith.addf %217, %219 : vector<8x32xf32>
    %221 = math.tanh %220 : vector<8x32xf32>
    %222 = arith.subf %192, %221 : vector<8x32xf32>
    %223 = arith.mulf %215, %222 : vector<8x32xf32>
    %224 = arith.addf %221, %223 : vector<8x32xf32>
    %225 = arith.index_cast %196 : i32 to index
    %c0_96 = arith.constant 0 : index
    %226 = vector.load %arg6[%225, %c0_96] : memref<64x32xf32, #tpu.memory_space<vmem>>, vector<8x32xf32>
    tpu.vector_store %arg6[%225, %c0_96], %224 {strides = array<i32>} : memref<64x32xf32, #tpu.memory_space<vmem>>, vector<8x32xf32>,
    %c6_i32 = arith.constant 6 : i32
    %c8_i32_97 = arith.constant 8 : i32
    %227 = arith.muli %c6_i32, %c8_i32_97 : i32
    %228 = tpu.assume_multiple %227, 8 : i32
    %cst_98 = arith.constant dense<0.000000e+00> : vector<8x32xf32>
    %229 = tpu.matmul %224, %26, %cst_98 {dimension_numbers = #tpu.dot_dimension_numbers<[1], [0], [0], [1], [0, 0, 1, 1], [], []>} : vector<8x32xf32>, vector<32x32xf32>, vector<8x32xf32> -> vector<8x32xf32>
    %cst_99 = arith.constant dense<0.000000e+00> : vector<8x32xf32>
    %230 = tpu.matmul %224, %28, %cst_99 {dimension_numbers = #tpu.dot_dimension_numbers<[1], [0], [0], [1], [0, 0, 1, 1], [], []>} : vector<8x32xf32>, vector<32x32xf32>, vector<8x32xf32> -> vector<8x32xf32>
    %cst_100 = arith.constant dense<0.000000e+00> : vector<8x32xf32>
    %231 = tpu.matmul %224, %30, %cst_100 {dimension_numbers = #tpu.dot_dimension_numbers<[1], [0], [0], [1], [0, 0, 1, 1], [], []>} : vector<8x32xf32>, vector<32x32xf32>, vector<8x32xf32> -> vector<8x32xf32>
    %232 = arith.index_cast %228 : i32 to index
    %c0_101 = arith.constant 0 : index
    %233 = vector.load %arg7[%232, %c0_101] : memref<64x32xf32, #tpu.memory_space<vmem>>, vector<8x32xf32>
    %234 = arith.addf %233, %229 : vector<8x32xf32>
    %235 = arith.negf %234 : vector<8x32xf32>
    %236 = math.exp %235 : vector<8x32xf32>
    %cst_102 = arith.constant 1.000000e+00 : f32
    %237 = vector.broadcast %cst_102 : f32 to vector<8x32xf32>
    %238 = arith.addf %237, %236 : vector<8x32xf32>
    %239 = arith.divf %237, %238 : vector<8x32xf32>
    %240 = arith.index_cast %228 : i32 to index
    %c0_103 = arith.constant 0 : index
    %241 = vector.load %arg8[%240, %c0_103] : memref<64x32xf32, #tpu.memory_space<vmem>>, vector<8x32xf32>
    %242 = arith.addf %241, %230 : vector<8x32xf32>
    %243 = arith.negf %242 : vector<8x32xf32>
    %244 = math.exp %243 : vector<8x32xf32>
    %cst_104 = arith.constant 1.000000e+00 : f32
    %245 = vector.broadcast %cst_104 : f32 to vector<8x32xf32>
    %246 = arith.addf %245, %244 : vector<8x32xf32>
    %247 = arith.divf %245, %246 : vector<8x32xf32>
    %248 = arith.index_cast %228 : i32 to index
    %c0_105 = arith.constant 0 : index
    %249 = vector.load %arg9[%248, %c0_105] : memref<64x32xf32, #tpu.memory_space<vmem>>, vector<8x32xf32>
    %250 = arith.addf %231, %33 : vector<8x32xf32>
    %251 = arith.mulf %239, %250 : vector<8x32xf32>
    %252 = arith.addf %249, %251 : vector<8x32xf32>
    %253 = math.tanh %252 : vector<8x32xf32>
    %254 = arith.subf %224, %253 : vector<8x32xf32>
    %255 = arith.mulf %247, %254 : vector<8x32xf32>
    %256 = arith.addf %253, %255 : vector<8x32xf32>
    %257 = arith.index_cast %228 : i32 to index
    %c0_106 = arith.constant 0 : index
    %258 = vector.load %arg6[%257, %c0_106] : memref<64x32xf32, #tpu.memory_space<vmem>>, vector<8x32xf32>
    tpu.vector_store %arg6[%257, %c0_106], %256 {strides = array<i32>} : memref<64x32xf32, #tpu.memory_space<vmem>>, vector<8x32xf32>,
    %c7_i32 = arith.constant 7 : i32
    %c8_i32_107 = arith.constant 8 : i32
    %259 = arith.muli %c7_i32, %c8_i32_107 : i32
    %260 = tpu.assume_multiple %259, 8 : i32
    %cst_108 = arith.constant dense<0.000000e+00> : vector<8x32xf32>
    %261 = tpu.matmul %256, %26, %cst_108 {dimension_numbers = #tpu.dot_dimension_numbers<[1], [0], [0], [1], [0, 0, 1, 1], [], []>} : vector<8x32xf32>, vector<32x32xf32>, vector<8x32xf32> -> vector<8x32xf32>
    %cst_109 = arith.constant dense<0.000000e+00> : vector<8x32xf32>
    %262 = tpu.matmul %256, %28, %cst_109 {dimension_numbers = #tpu.dot_dimension_numbers<[1], [0], [0], [1], [0, 0, 1, 1], [], []>} : vector<8x32xf32>, vector<32x32xf32>, vector<8x32xf32> -> vector<8x32xf32>
    %cst_110 = arith.constant dense<0.000000e+00> : vector<8x32xf32>
    %263 = tpu.matmul %256, %30, %cst_110 {dimension_numbers = #tpu.dot_dimension_numbers<[1], [0], [0], [1], [0, 0, 1, 1], [], []>} : vector<8x32xf32>, vector<32x32xf32>, vector<8x32xf32> -> vector<8x32xf32>
    %264 = arith.index_cast %260 : i32 to index
    %c0_111 = arith.constant 0 : index
    %265 = vector.load %arg7[%264, %c0_111] : memref<64x32xf32, #tpu.memory_space<vmem>>, vector<8x32xf32>
    %266 = arith.addf %265, %261 : vector<8x32xf32>
    %267 = arith.negf %266 : vector<8x32xf32>
    %268 = math.exp %267 : vector<8x32xf32>
    %cst_112 = arith.constant 1.000000e+00 : f32
    %269 = vector.broadcast %cst_112 : f32 to vector<8x32xf32>
    %270 = arith.addf %269, %268 : vector<8x32xf32>
    %271 = arith.divf %269, %270 : vector<8x32xf32>
    %272 = arith.index_cast %260 : i32 to index
    %c0_113 = arith.constant 0 : index
    %273 = vector.load %arg8[%272, %c0_113] : memref<64x32xf32, #tpu.memory_space<vmem>>, vector<8x32xf32>
    %274 = arith.addf %273, %262 : vector<8x32xf32>
    %275 = arith.negf %274 : vector<8x32xf32>
    %276 = math.exp %275 : vector<8x32xf32>
    %cst_114 = arith.constant 1.000000e+00 : f32
    %277 = vector.broadcast %cst_114 : f32 to vector<8x32xf32>
    %278 = arith.addf %277, %276 : vector<8x32xf32>
    %279 = arith.divf %277, %278 : vector<8x32xf32>
    %280 = arith.index_cast %260 : i32 to index
    %c0_115 = arith.constant 0 : index
    %281 = vector.load %arg9[%280, %c0_115] : memref<64x32xf32, #tpu.memory_space<vmem>>, vector<8x32xf32>
    %282 = arith.addf %263, %33 : vector<8x32xf32>
    %283 = arith.mulf %271, %282 : vector<8x32xf32>
    %284 = arith.addf %281, %283 : vector<8x32xf32>
    %285 = math.tanh %284 : vector<8x32xf32>
    %286 = arith.subf %256, %285 : vector<8x32xf32>
    %287 = arith.mulf %279, %286 : vector<8x32xf32>
    %288 = arith.addf %285, %287 : vector<8x32xf32>
    %289 = arith.index_cast %260 : i32 to index
    %c0_116 = arith.constant 0 : index
    %290 = vector.load %arg6[%289, %c0_116] : memref<64x32xf32, #tpu.memory_space<vmem>>, vector<8x32xf32>
    tpu.vector_store %arg6[%289, %c0_116], %288 {strides = array<i32>} : memref<64x32xf32, #tpu.memory_space<vmem>>, vector<8x32xf32>,
    %c8_i32_117 = arith.constant 8 : i32
    return
  }
}

</mosaic_0001>

<llo_original>
// kernel: tpu_custom_call.1
$region0: #{tpu_custom_call.1}
  #allocation0 [shape = 'u32[]', space=smem, size = 0x4, offset = 0x4, fixed_abs, tag = 'smem constant byte address 0x4 - core index']
  #allocation1 [shape = 'u32[144,128]{1,0:T(1,128)}', space=vmem, size = 0x12000, scoped, tag = 'internal scratch']
  #allocation2 [shape = 'f32[64,32]{1,0:T(8,128)}', space=vmem, size = 0x8000, scoped, tag = 'scratch operand']
  #allocation3 [shape = 'f32[64,32]{1,0:T(8,128)}', space=vmem, size = 0x8000, scoped, tag = 'scratch operand']
  #allocation4 [shape = 'f32[64,32]{1,0:T(8,128)}', space=vmem, size = 0x8000, scoped, tag = 'scratch operand']
  %s0 = inlined_call_operand.vmem [shape: f32[64,16], index: 0, kind: input, shape index: {}]
  %s1 = inlined_call_operand.vmem [shape: f32[3,16,32], index: 1, kind: input, shape index: {}]
  %s2 = inlined_call_operand.hbm [shape: f32[3,32,32], index: 2, kind: input, shape index: {}]
  %s3 = inlined_call_operand.vmem [shape: f32[3,1,32], index: 3, kind: input, shape index: {}]
  %s4 = inlined_call_operand.vmem [shape: f32[1,32], index: 4, kind: input, shape index: {}]
  %s5 = inlined_call_operand.vmem [shape: f32[8,32], index: 5, kind: input, shape index: {}]
  %s6 = inlined_call_operand.vmem [shape: f32[64,32], index: 6, kind: output, shape index: {}]
  %s7 = sld [smem:[#allocation0]]
  $region38: #{tpu_custom_call.1} parent=0
    _
  %s9 = ssub.s32 1, %s7
  %s10 = scalar_select 0, %s9, %s7
  $region1: #{tpu_custom_call.1} parent=0
    #allocation5 [shape = 'u8[49152]{0}', space=vmem, size = 0xc000, scoped, tag = 'input window, operand 2, single buffered']
    #allocation6 [shape = 's32[1]{0}', space=sflag, size = 0x4, scoped, tag = 'scoped memory for tpu_custom_call.1']
    %11 = vsyncpa [#allocation6], 0
    // Predicated region
    $region2: #{tpu_custom_call.1} parent=1 // pred_check
      _
    $region3: #{tpu_custom_call.1} parent=1 // pred_check_branch
      %13 = sbr.rel (0) target = $region5
    $region4: #{tpu_custom_call.1} parent=1 // pred_region
      _
    $region5: #{tpu_custom_call.1} parent=1 // pred_fallthru
      _
    // Predicated region
    $region6: #{tpu_custom_call.1} parent=1 // pred_check
      _
    $region7: #{tpu_custom_call.1} parent=1 // pred_check_branch
      %15 = sbr.rel (0) target = $region9
    $region8: #{tpu_custom_call.1} parent=1 // pred_region
      _
    $region9: #{tpu_custom_call.1} parent=1 // pred_fallthru
      _
    // Predicated region
    $region10: #{tpu_custom_call.1} parent=1 // pred_check
      _
    $region11: #{tpu_custom_call.1} parent=1 // pred_check_branch
      %17 = sbr.rel (0) target = $region13
    $region12: #{tpu_custom_call.1} parent=1 // pred_region
      %s19 = ssub.s32 1536, 1536
      %20 = vsyncadd [#allocation6], %s19
      %s21 = sshll.u32 [#allocation5], 4
      %s22 = int_to_ptr.vmem [resolvable:$true] %s21
      %27 = dma.hbm_to_vmem [thread:$0]  %s2, 1536, %s22, [#allocation6], 128, 128, 8
    $region13: #{tpu_custom_call.1} parent=1 // pred_fallthru
      _
    // Predicated region
    $region14: #{tpu_custom_call.1} parent=1 // pred_check
      _
    $region15: #{tpu_custom_call.1} parent=1 // pred_check_branch
      %29 = sbr.rel (0) target = $region17
    $region16: #{tpu_custom_call.1} parent=1 // pred_region
      _
    $region17: #{tpu_custom_call.1} parent=1 // pred_fallthru
      _
    // Predicated region
    $region18: #{tpu_custom_call.1} parent=1 // pred_check
      _
    $region19: #{tpu_custom_call.1} parent=1 // pred_check_branch
      %31 = sbr.rel (0) target = $region21
    $region20: #{tpu_custom_call.1} parent=1 // pred_region
      _
    $region21: #{tpu_custom_call.1} parent=1 // pred_fallthru
      _
    // Predicated region
    $region22: #{tpu_custom_call.1} parent=1 // pred_check
      _
    $region23: #{tpu_custom_call.1} parent=1 // pred_check_branch
      %33 = sbr.rel (0) target = $region25
    $region24: #{tpu_custom_call.1} parent=1 // pred_region
      _
    $region25: #{tpu_custom_call.1} parent=1 // pred_fallthru
      _
    // Predicated region
    $region26: #{tpu_custom_call.1} parent=1 // pred_check
      _
    $region27: #{tpu_custom_call.1} parent=1 // pred_check_branch
      %35 = sbr.rel (0) target = $region29
    $region28: #{tpu_custom_call.1} parent=1 // pred_region
      %36 = dma.done [#allocation6], 1536
    $region29: #{tpu_custom_call.1} parent=1 // pred_fallthru
      _
    %v37 = vld [vmem:[%s0] sm:$0xff]
    %v38 = vld [vmem:[%s0 + $0x8] sm:$0xff]
    %v39 = vld [vmem:[%s0 + $0x10] sm:$0xff]
    %v40 = vld [vmem:[%s0 + $0x18] sm:$0xff]
    %v41 = vld [vmem:[%s0 + $0x20] sm:$0xff]
    %v42 = vld [vmem:[%s0 + $0x28] sm:$0xff]
    %v43 = vld [vmem:[%s0 + $0x30] sm:$0xff]
    %v44 = vld [vmem:[%s0 + $0x38] sm:$0xff]
    %v45 = vld [vmem:[%s1] sm:$0xff]
    %v46 = vld [vmem:[%s1 + $0x8] sm:$0xff]
    %v47 = vld [vmem:[%s3] sm:$0x1]
    %v49 = vlaneseq
    %v50 = vshrl.u32 %v49, 7
    %v51 = vsub.s32 0, %v50
    %v52 = vrot.slane %v47, %v51
    %vm54 = vcmask 130048
    %v56 = vsel %vm54, %v37, 0
    %v59 = vsel %vm54, %v38, 0
    %v62 = vsel %vm54, %v39, 0
    %v65 = vsel %vm54, %v40, 0
    %v68 = vsel %vm54, %v41, 0
    %v71 = vsel %vm54, %v42, 0
    %v74 = vsel %vm54, %v43, 0
    %v77 = vsel %vm54, %v44, 0
    %79 = vmatprep.subr.mxu0 0.0
    %80 = vmatpush1.msra.mxu0 %v45
    %81 = vmatprep.subr.mxu0 0.0
    %82 = vmatpush1.msra.mxu0 %v46
    %83 = vmatprep.subr.mxu0 0.0
    %84 = vmatpush1.msra.mxu0 0.0
    %85 = vmatprep.subr.mxu0 0.0
    %86 = vmatpush1.msra.mxu0 0.0
    %87 = vmatprep.subr.mxu0 0.0
    %88 = vmatpush1.msra.mxu0 0.0
    %89 = vmatprep.subr.mxu0 0.0
    %90 = vmatpush1.msra.mxu0 0.0
    %91 = vmatprep.subr.mxu0 0.0
    %92 = vmatpush1.msra.mxu0 0.0
    %93 = vmatprep.subr.mxu0 0.0
    %94 = vmatpush1.msra.mxu0 0.0
    %95 = vmatprep.subr.mxu0 0.0
    %96 = vmatpush1.msra.mxu0 0.0
    %97 = vmatprep.subr.mxu0 0.0
    %98 = vmatpush1.msra.mxu0 0.0
    %99 = vmatprep.subr.mxu0 0.0
    %100 = vmatpush1.msra.mxu0 0.0
    %101 = vmatprep.subr.mxu0 0.0
    %102 = vmatpush1.msra.mxu0 0.0
    %103 = vmatprep.subr.mxu0 0.0
    %104 = vmatpush1.msra.mxu0 0.0
    %105 = vmatprep.subr.mxu0 0.0
    %106 = vmatpush1.msra.mxu0 0.0
    %107 = vmatprep.subr.mxu0 0.0
    %108 = vmatpush1.msra.mxu0 0.0
    %109 = vmatprep.subr.mxu0 0.0
    %110 = vmatpush1.msra.mxu0 0.0
    %111 = vmatprep.subr.mxu0 0.0
    %112 = vmatpush1.msra.mxu0 0.0
    %113 = vmatprep.subr.mxu0 0.0
    %114 = vmatpush1.msra.mxu0 0.0
    %115 = vmatprep.subr.mxu0 0.0
    %116 = vmatpush1.msra.mxu0 0.0
    %117 = vmatprep.subr.mxu0 0.0
    %118 = vmatpush1.msra.mxu0 0.0
    %119 = vmatprep.subr.mxu0 0.0
    %120 = vmatpush1.msra.mxu0 0.0
    %121 = vmatprep.subr.mxu0 0.0
    %122 = vmatpush1.msra.mxu0 0.0
    %123 = vmatprep.subr.mxu0 0.0
    %124 = vmatpush1.msra.mxu0 0.0
    %125 = vmatprep.subr.mxu0 0.0
    %126 = vmatpush1.msra.mxu0 0.0
    %127 = vmatprep.subr.mxu0 0.0
    %128 = vmatpush1.msra.mxu0 0.0
    %129 = vmatprep.subr.mxu0 0.0
    %130 = vmatpush1.msra.mxu0 0.0
    %131 = vmatprep.subr.mxu0 0.0
    %132 = vmatpush1.msra.mxu0 0.0
    %133 = vmatprep.subr.mxu0 0.0
    %134 = vmatpush1.msra.mxu0 0.0
    %135 = vmatprep.subr.mxu0 0.0
    %136 = vmatpush1.msra.mxu0 0.0
    %137 = vmatprep.subr.mxu0 0.0
    %138 = vmatpush1.msra.mxu0 0.0
    %139 = vmatprep.subr.mxu0 0.0
    %140 = vmatpush1.msra.mxu0 0.0
    %141 = vmatprep.subr.mxu0 0.0
    %142 = vmatpush1.msra.mxu0 0.0
    %143 = vmatprep.mubr.f32.mxu0 0.0
    %144 = vmatmul.mubr.f32.gmra.mrb[0].mxu0 %v56
    %v145 = vpop.f32.mrb[0].mxu0
    %v146 = vadd.f32 %v52, %v145
    %v147 = vpop.f32.mrb[0].mxu0
    %148 = vmatprep.mubr.f32.mxu0 0.0
    %149 = vmatmul.mubr.f32.gmra.mrb[0].mxu0 %v59
    %v150 = vpop.f32.mrb[0].mxu0
    %v151 = vadd.f32 %v52, %v150
    %v152 = vpop.f32.mrb[0].mxu0
    %153 = vmatprep.mubr.f32.mxu0 0.0
    %154 = vmatmul.mubr.f32.gmra.mrb[0].mxu0 %v62
    %v155 = vpop.f32.mrb[0].mxu0
    %v156 = vadd.f32 %v52, %v155
    %v157 = vpop.f32.mrb[0].mxu0
    %158 = vmatprep.mubr.f32.mxu0 0.0
    %159 = vmatmul.mubr.f32.gmra.mrb[0].mxu0 %v65
    %v160 = vpop.f32.mrb[0].mxu0
    %v161 = vadd.f32 %v52, %v160
    %v162 = vpop.f32.mrb[0].mxu0
    %163 = vmatprep.mubr.f32.mxu0 0.0
    %164 = vmatmul.mubr.f32.gmra.mrb[0].mxu0 %v68
    %v165 = vpop.f32.mrb[0].mxu0
    %v166 = vadd.f32 %v52, %v165
    %v167 = vpop.f32.mrb[0].mxu0
    %168 = vmatprep.mubr.f32.mxu0 0.0
    %169 = vmatmul.mubr.f32.gmra.mrb[0].mxu0 %v71
    %v170 = vpop.f32.mrb[0].mxu0
    %v171 = vadd.f32 %v52, %v170
    %v172 = vpop.f32.mrb[0].mxu0
    %173 = vmatprep.mubr.f32.mxu0 0.0
    %174 = vmatmul.mubr.f32.gmra.mrb[0].mxu0 %v74
    %v175 = vpop.f32.mrb[0].mxu0
    %v176 = vadd.f32 %v52, %v175
    %v177 = vpop.f32.mrb[0].mxu0
    %178 = vmatprep.mubr.f32.mxu0 0.0
    %179 = vmatmul.mubr.f32.gmra.mrb[0].mxu0 %v77
    %v180 = vpop.f32.mrb[0].mxu0
    %v181 = vadd.f32 %v52, %v180
    %v182 = vpop.f32.mrb[0].mxu0
    %183 = vdwg.mxu0
    %vm184 = vcmask 261120
    %185 = vst.msk [vmem:[#allocation2] sm:$0xff] %vm184, %v146
    %186 = vst.msk [vmem:[#allocation2 + $0x8] sm:$0xff] %vm184, %v151
    %187 = vst.msk [vmem:[#allocation2 + $0x10] sm:$0xff] %vm184, %v156
    %188 = vst.msk [vmem:[#allocation2 + $0x18] sm:$0xff] %vm184, %v161
    %189 = vst.msk [vmem:[#allocation2 + $0x20] sm:$0xff] %vm184, %v166
    %190 = vst.msk [vmem:[#allocation2 + $0x28] sm:$0xff] %vm184, %v171
    %191 = vst.msk [vmem:[#allocation2 + $0x30] sm:$0xff] %vm184, %v176
    %192 = vst.msk [vmem:[#allocation2 + $0x38] sm:$0xff] %vm184, %v181
    %s193 = scalar_lea.vmem %s1, 16
    %v194 = vld [vmem:[%s193] sm:$0xff]
    %v195 = vld [vmem:[%s193 + $0x8] sm:$0xff]
    %s196 = scalar_lea.vmem %s3, 1
    %v197 = vld [vmem:[%s196] sm:$0x1]
    %v199 = vlaneseq
    %v200 = vshrl.u32 %v199, 7
    %v201 = vsub.s32 0, %v200
    %v202 = vrot.slane %v197, %v201
    %204 = vmatprep.subr.mxu0 0.0
    %205 = vmatpush1.msra.mxu0 %v194
    %206 = vmatprep.subr.mxu0 0.0
    %207 = vmatpush1.msra.mxu0 %v195
    %208 = vmatprep.subr.mxu0 0.0
    %209 = vmatpush1.msra.mxu0 0.0
    %210 = vmatprep.subr.mxu0 0.0
    %211 = vmatpush1.msra.mxu0 0.0
    %212 = vmatprep.subr.mxu0 0.0
    %213 = vmatpush1.msra.mxu0 0.0
    %214 = vmatprep.subr.mxu0 0.0
    %215 = vmatpush1.msra.mxu0 0.0
    %216 = vmatprep.subr.mxu0 0.0
    %217 = vmatpush1.msra.mxu0 0.0
    %218 = vmatprep.subr.mxu0 0.0
    %219 = vmatpush1.msra.mxu0 0.0
    %220 = vmatprep.subr.mxu0 0.0
    %221 = vmatpush1.msra.mxu0 0.0
    %222 = vmatprep.subr.mxu0 0.0
    %223 = vmatpush1.msra.mxu0 0.0
    %224 = vmatprep.subr.mxu0 0.0
    %225 = vmatpush1.msra.mxu0 0.0
    %226 = vmatprep.subr.mxu0 0.0
    %227 = vmatpush1.msra.mxu0 0.0
    %228 = vmatprep.subr.mxu0 0.0
    %229 = vmatpush1.msra.mxu0 0.0
    %230 = vmatprep.subr.mxu0 0.0
    %231 = vmatpush1.msra.mxu0 0.0
    %232 = vmatprep.subr.mxu0 0.0
    %233 = vmatpush1.msra.mxu0 0.0
    %234 = vmatprep.subr.mxu0 0.0
    %235 = vmatpush1.msra.mxu0 0.0
    %236 = vmatprep.subr.mxu0 0.0
    %237 = vmatpush1.msra.mxu0 0.0
    %238 = vmatprep.subr.mxu0 0.0
    %239 = vmatpush1.msra.mxu0 0.0
    %240 = vmatprep.subr.mxu0 0.0
    %241 = vmatpush1.msra.mxu0 0.0
    %242 = vmatprep.subr.mxu0 0.0
    %243 = vmatpush1.msra.mxu0 0.0
    %244 = vmatprep.subr.mxu0 0.0
    %245 = vmatpush1.msra.mxu0 0.0
    %246 = vmatprep.subr.mxu0 0.0
    %247 = vmatpush1.msra.mxu0 0.0
    %248 = vmatprep.subr.mxu0 0.0
    %249 = vmatpush1.msra.mxu0 0.0
    %250 = vmatprep.subr.mxu0 0.0
    %251 = vmatpush1.msra.mxu0 0.0
    %252 = vmatprep.subr.mxu0 0.0
    %253 = vmatpush1.msra.mxu0 0.0
    %254 = vmatprep.subr.mxu0 0.0
    %255 = vmatpush1.msra.mxu0 0.0
    %256 = vmatprep.subr.mxu0 0.0
    %257 = vmatpush1.msra.mxu0 0.0
    %258 = vmatprep.subr.mxu0 0.0
    %259 = vmatpush1.msra.mxu0 0.0
    %260 = vmatprep.subr.mxu0 0.0
    %261 = vmatpush1.msra.mxu0 0.0
    %262 = vmatprep.subr.mxu0 0.0
    %263 = vmatpush1.msra.mxu0 0.0
    %264 = vmatprep.subr.mxu0 0.0
    %265 = vmatpush1.msra.mxu0 0.0
    %266 = vmatprep.subr.mxu0 0.0
    %267 = vmatpush1.msra.mxu0 0.0
    %268 = vmatprep.mubr.f32.mxu0 0.0
    %269 = vmatmul.mubr.f32.gmra.mrb[0].mxu0 %v56
    %v270 = vpop.f32.mrb[0].mxu0
    %v271 = vadd.f32 %v202, %v270
    %v272 = vpop.f32.mrb[0].mxu0
    %273 = vmatprep.mubr.f32.mxu0 0.0
    %274 = vmatmul.mubr.f32.gmra.mrb[0].mxu0 %v59
    %v275 = vpop.f32.mrb[0].mxu0
    %v276 = vadd.f32 %v202, %v275
    %v277 = vpop.f32.mrb[0].mxu0
    %278 = vmatprep.mubr.f32.mxu0 0.0
    %279 = vmatmul.mubr.f32.gmra.mrb[0].mxu0 %v62
    %v280 = vpop.f32.mrb[0].mxu0
    %v281 = vadd.f32 %v202, %v280
    %v282 = vpop.f32.mrb[0].mxu0
    %283 = vmatprep.mubr.f32.mxu0 0.0
    %284 = vmatmul.mubr.f32.gmra.mrb[0].mxu0 %v65
    %v285 = vpop.f32.mrb[0].mxu0
    %v286 = vadd.f32 %v202, %v285
    %v287 = vpop.f32.mrb[0].mxu0
    %288 = vmatprep.mubr.f32.mxu0 0.0
    %289 = vmatmul.mubr.f32.gmra.mrb[0].mxu0 %v68
    %v290 = vpop.f32.mrb[0].mxu0
    %v291 = vadd.f32 %v202, %v290
    %v292 = vpop.f32.mrb[0].mxu0
    %293 = vmatprep.mubr.f32.mxu0 0.0
    %294 = vmatmul.mubr.f32.gmra.mrb[0].mxu0 %v71
    %v295 = vpop.f32.mrb[0].mxu0
    %v296 = vadd.f32 %v202, %v295
    %v297 = vpop.f32.mrb[0].mxu0
    %298 = vmatprep.mubr.f32.mxu0 0.0
    %299 = vmatmul.mubr.f32.gmra.mrb[0].mxu0 %v74
    %v300 = vpop.f32.mrb[0].mxu0
    %v301 = vadd.f32 %v202, %v300
    %v302 = vpop.f32.mrb[0].mxu0
    %303 = vmatprep.mubr.f32.mxu0 0.0
    %304 = vmatmul.mubr.f32.gmra.mrb[0].mxu0 %v77
    %v305 = vpop.f32.mrb[0].mxu0
    %v306 = vadd.f32 %v202, %v305
    %v307 = vpop.f32.mrb[0].mxu0
    %308 = vdwg.mxu0
    %309 = vst.msk [vmem:[#allocation3] sm:$0xff] %vm184, %v271
    %310 = vst.msk [vmem:[#allocation3 + $0x8] sm:$0xff] %vm184, %v276
    %311 = vst.msk [vmem:[#allocation3 + $0x10] sm:$0xff] %vm184, %v281
    %312 = vst.msk [vmem:[#allocation3 + $0x18] sm:$0xff] %vm184, %v286
    %313 = vst.msk [vmem:[#allocation3 + $0x20] sm:$0xff] %vm184, %v291
    %314 = vst.msk [vmem:[#allocation3 + $0x28] sm:$0xff] %vm184, %v296
    %315 = vst.msk [vmem:[#allocation3 + $0x30] sm:$0xff] %vm184, %v301
    %316 = vst.msk [vmem:[#allocation3 + $0x38] sm:$0xff] %vm184, %v306
    %s317 = scalar_lea.vmem %s1, 32
    %v318 = vld [vmem:[%s317] sm:$0xff]
    %v319 = vld [vmem:[%s317 + $0x8] sm:$0xff]
    %s320 = scalar_lea.vmem %s3, 2
    %v321 = vld [vmem:[%s320] sm:$0x1]
    %v323 = vlaneseq
    %v324 = vshrl.u32 %v323, 7
    %v325 = vsub.s32 0, %v324
    %v326 = vrot.slane %v321, %v325
    %328 = vmatprep.subr.mxu0 0.0
    %329 = vmatpush1.msra.mxu0 %v318
    %330 = vmatprep.subr.mxu0 0.0
    %331 = vmatpush1.msra.mxu0 %v319
    %332 = vmatprep.subr.mxu0 0.0
    %333 = vmatpush1.msra.mxu0 0.0
    %334 = vmatprep.subr.mxu0 0.0
    %335 = vmatpush1.msra.mxu0 0.0
    %336 = vmatprep.subr.mxu0 0.0
    %337 = vmatpush1.msra.mxu0 0.0
    %338 = vmatprep.subr.mxu0 0.0
    %339 = vmatpush1.msra.mxu0 0.0
    %340 = vmatprep.subr.mxu0 0.0
    %341 = vmatpush1.msra.mxu0 0.0
    %342 = vmatprep.subr.mxu0 0.0
    %343 = vmatpush1.msra.mxu0 0.0
    %344 = vmatprep.subr.mxu0 0.0
    %345 = vmatpush1.msra.mxu0 0.0
    %346 = vmatprep.subr.mxu0 0.0
    %347 = vmatpush1.msra.mxu0 0.0
    %348 = vmatprep.subr.mxu0 0.0
    %349 = vmatpush1.msra.mxu0 0.0
    %350 = vmatprep.subr.mxu0 0.0
    %351 = vmatpush1.msra.mxu0 0.0
    %352 = vmatprep.subr.mxu0 0.0
    %353 = vmatpush1.msra.mxu0 0.0
    %354 = vmatprep.subr.mxu0 0.0
    %355 = vmatpush1.msra.mxu0 0.0
    %356 = vmatprep.subr.mxu0 0.0
    %357 = vmatpush1.msra.mxu0 0.0
    %358 = vmatprep.subr.mxu0 0.0
    %359 = vmatpush1.msra.mxu0 0.0
    %360 = vmatprep.subr.mxu0 0.0
    %361 = vmatpush1.msra.mxu0 0.0
    %362 = vmatprep.subr.mxu0 0.0
    %363 = vmatpush1.msra.mxu0 0.0
    %364 = vmatprep.subr.mxu0 0.0
    %365 = vmatpush1.msra.mxu0 0.0
    %366 = vmatprep.subr.mxu0 0.0
    %367 = vmatpush1.msra.mxu0 0.0
    %368 = vmatprep.subr.mxu0 0.0
    %369 = vmatpush1.msra.mxu0 0.0
    %370 = vmatprep.subr.mxu0 0.0
    %371 = vmatpush1.msra.mxu0 0.0
    %372 = vmatprep.subr.mxu0 0.0
    %373 = vmatpush1.msra.mxu0 0.0
    %374 = vmatprep.subr.mxu0 0.0
    %375 = vmatpush1.msra.mxu0 0.0
    %376 = vmatprep.subr.mxu0 0.0
    %377 = vmatpush1.msra.mxu0 0.0
    %378 = vmatprep.subr.mxu0 0.0
    %379 = vmatpush1.msra.mxu0 0.0
    %380 = vmatprep.subr.mxu0 0.0
    %381 = vmatpush1.msra.mxu0 0.0
    %382 = vmatprep.subr.mxu0 0.0
    %383 = vmatpush1.msra.mxu0 0.0
    %384 = vmatprep.subr.mxu0 0.0
    %385 = vmatpush1.msra.mxu0 0.0
    %386 = vmatprep.subr.mxu0 0.0
    %387 = vmatpush1.msra.mxu0 0.0
    %388 = vmatprep.subr.mxu0 0.0
    %389 = vmatpush1.msra.mxu0 0.0
    %390 = vmatprep.subr.mxu0 0.0
    %391 = vmatpush1.msra.mxu0 0.0
    %392 = vmatprep.mubr.f32.mxu0 0.0
    %393 = vmatmul.mubr.f32.gmra.mrb[0].mxu0 %v56
    %v394 = vpop.f32.mrb[0].mxu0
    %v395 = vadd.f32 %v326, %v394
    %v396 = vpop.f32.mrb[0].mxu0
    %397 = vmatprep.mubr.f32.mxu0 0.0
    %398 = vmatmul.mubr.f32.gmra.mrb[0].mxu0 %v59
    %v399 = vpop.f32.mrb[0].mxu0
    %v400 = vadd.f32 %v326, %v399
    %v401 = vpop.f32.mrb[0].mxu0
    %402 = vmatprep.mubr.f32.mxu0 0.0
    %403 = vmatmul.mubr.f32.gmra.mrb[0].mxu0 %v62
    %v404 = vpop.f32.mrb[0].mxu0
    %v405 = vadd.f32 %v326, %v404
    %v406 = vpop.f32.mrb[0].mxu0
    %407 = vmatprep.mubr.f32.mxu0 0.0
    %408 = vmatmul.mubr.f32.gmra.mrb[0].mxu0 %v65
    %v409 = vpop.f32.mrb[0].mxu0
    %v410 = vadd.f32 %v326, %v409
    %v411 = vpop.f32.mrb[0].mxu0
    %412 = vmatprep.mubr.f32.mxu0 0.0
    %413 = vmatmul.mubr.f32.gmra.mrb[0].mxu0 %v68
    %v414 = vpop.f32.mrb[0].mxu0
    %v415 = vadd.f32 %v326, %v414
    %v416 = vpop.f32.mrb[0].mxu0
    %417 = vmatprep.mubr.f32.mxu0 0.0
    %418 = vmatmul.mubr.f32.gmra.mrb[0].mxu0 %v71
    %v419 = vpop.f32.mrb[0].mxu0
    %v420 = vadd.f32 %v326, %v419
    %v421 = vpop.f32.mrb[0].mxu0
    %422 = vmatprep.mubr.f32.mxu0 0.0
    %423 = vmatmul.mubr.f32.gmra.mrb[0].mxu0 %v74
    %v424 = vpop.f32.mrb[0].mxu0
    %v425 = vadd.f32 %v326, %v424
    %v426 = vpop.f32.mrb[0].mxu0
    %427 = vmatprep.mubr.f32.mxu0 0.0
    %428 = vmatmul.mubr.f32.gmra.mrb[0].mxu0 %v77
    %v429 = vpop.f32.mrb[0].mxu0
    %v430 = vadd.f32 %v326, %v429
    %v431 = vpop.f32.mrb[0].mxu0
    %432 = vdwg.mxu0
    %433 = vst.msk [vmem:[#allocation4] sm:$0xff] %vm184, %v395
    %434 = vst.msk [vmem:[#allocation4 + $0x8] sm:$0xff] %vm184, %v400
    %435 = vst.msk [vmem:[#allocation4 + $0x10] sm:$0xff] %vm184, %v405
    %436 = vst.msk [vmem:[#allocation4 + $0x18] sm:$0xff] %vm184, %v410
    %437 = vst.msk [vmem:[#allocation4 + $0x20] sm:$0xff] %vm184, %v415
    %438 = vst.msk [vmem:[#allocation4 + $0x28] sm:$0xff] %vm184, %v420
    %439 = vst.msk [vmem:[#allocation4 + $0x30] sm:$0xff] %vm184, %v425
    %440 = vst.msk [vmem:[#allocation4 + $0x38] sm:$0xff] %vm184, %v430
    %v441 = vld [vmem:[#allocation5] sm:$0xff]
    %v442 = vld [vmem:[#allocation5 + $0x8] sm:$0xff]
    %v443 = vld [vmem:[#allocation5 + $0x10] sm:$0xff]
    %v444 = vld [vmem:[#allocation5 + $0x18] sm:$0xff]
    %s445 = scalar_lea.vmem [#allocation5], 32
    %v446 = vld [vmem:[%s445] sm:$0xff]
    %v447 = vld [vmem:[%s445 + $0x8] sm:$0xff]
    %v448 = vld [vmem:[%s445 + $0x10] sm:$0xff]
    %v449 = vld [vmem:[%s445 + $0x18] sm:$0xff]
    %s450 = scalar_lea.vmem [#allocation5], 64
    %v451 = vld [vmem:[%s450] sm:$0xff]
    %v452 = vld [vmem:[%s450 + $0x8] sm:$0xff]
    %v453 = vld [vmem:[%s450 + $0x10] sm:$0xff]
    %v454 = vld [vmem:[%s450 + $0x18] sm:$0xff]
    %v455 = vld [vmem:[%s4] sm:$0x1]
    %v457 = vlaneseq
    %v458 = vshrl.u32 %v457, 7
    %v459 = vsub.s32 0, %v458
    %v460 = vrot.slane %v455, %v459
    %v462 = vld [vmem:[%s5] sm:$0xff]
    %v464 = vsel %vm184, %v462, 0
    %466 = vmatprep.subr.mxu0 0.0
    %467 = vmatpush1.msra.mxu0 %v441
    %468 = vmatprep.subr.mxu0 0.0
    %469 = vmatpush1.msra.mxu0 %v442
    %470 = vmatprep.subr.mxu0 0.0
    %471 = vmatpush1.msra.mxu0 %v443
    %472 = vmatprep.subr.mxu0 0.0
    %473 = vmatpush1.msra.mxu0 %v444
    %474 = vmatprep.subr.mxu0 0.0
    %475 = vmatpush1.msra.mxu0 0.0
    %476 = vmatprep.subr.mxu0 0.0
    %477 = vmatpush1.msra.mxu0 0.0
    %478 = vmatprep.subr.mxu0 0.0
    %479 = vmatpush1.msra.mxu0 0.0
    %480 = vmatprep.subr.mxu0 0.0
    %481 = vmatpush1.msra.mxu0 0.0
    %482 = vmatprep.subr.mxu0 0.0
    %483 = vmatpush1.msra.mxu0 0.0
    %484 = vmatprep.subr.mxu0 0.0
    %485 = vmatpush1.msra.mxu0 0.0
    %486 = vmatprep.subr.mxu0 0.0
    %487 = vmatpush1.msra.mxu0 0.0
    %488 = vmatprep.subr.mxu0 0.0
    %489 = vmatpush1.msra.mxu0 0.0
    %490 = vmatprep.subr.mxu0 0.0
    %491 = vmatpush1.msra.mxu0 0.0
    %492 = vmatprep.subr.mxu0 0.0
    %493 = vmatpush1.msra.mxu0 0.0
    %494 = vmatprep.subr.mxu0 0.0
    %495 = vmatpush1.msra.mxu0 0.0
    %496 = vmatprep.subr.mxu0 0.0
    %497 = vmatpush1.msra.mxu0 0.0
    %498 = vmatprep.subr.mxu0 0.0
    %499 = vmatpush1.msra.mxu0 0.0
    %500 = vmatprep.subr.mxu0 0.0
    %501 = vmatpush1.msra.mxu0 0.0
    %502 = vmatprep.subr.mxu0 0.0
    %503 = vmatpush1.msra.mxu0 0.0
    %504 = vmatprep.subr.mxu0 0.0
    %505 = vmatpush1.msra.mxu0 0.0
    %506 = vmatprep.subr.mxu0 0.0
    %507 = vmatpush1.msra.mxu0 0.0
    %508 = vmatprep.subr.mxu0 0.0
    %509 = vmatpush1.msra.mxu0 0.0
    %510 = vmatprep.subr.mxu0 0.0
    %511 = vmatpush1.msra.mxu0 0.0
    %512 = vmatprep.subr.mxu0 0.0
    %513 = vmatpush1.msra.mxu0 0.0
    %514 = vmatprep.subr.mxu0 0.0
    %515 = vmatpush1.msra.mxu0 0.0
    %516 = vmatprep.subr.mxu0 0.0
    %517 = vmatpush1.msra.mxu0 0.0
    %518 = vmatprep.subr.mxu0 0.0
    %519 = vmatpush1.msra.mxu0 0.0
    %520 = vmatprep.subr.mxu0 0.0
    %521 = vmatpush1.msra.mxu0 0.0
    %522 = vmatprep.subr.mxu0 0.0
    %523 = vmatpush1.msra.mxu0 0.0
    %524 = vmatprep.subr.mxu0 0.0
    %525 = vmatpush1.msra.mxu0 0.0
    %526 = vmatprep.subr.mxu0 0.0
    %527 = vmatpush1.msra.mxu0 0.0
    %528 = vmatprep.subr.mxu0 0.0
    %529 = vmatpush1.msra.mxu0 0.0
    %530 = vmatprep.mubr.f32.mxu0 0.0
    %531 = vmatmul.mubr.f32.gmra.mrb[0].mxu0 %v464
    %v532 = vpop.f32.mrb[0].mxu0
    %v533 = vadd.f32 0.0, %v532
    %v534 = vpop.f32.mrb[0].mxu0
    %535 = vdwg.mxu0
    %536 = vmatprep.subr.mxu0 0.0
    %537 = vmatpush1.msra.mxu0 %v446
    %538 = vmatprep.subr.mxu0 0.0
    %539 = vmatpush1.msra.mxu0 %v447
    %540 = vmatprep.subr.mxu0 0.0
    %541 = vmatpush1.msra.mxu0 %v448
    %542 = vmatprep.subr.mxu0 0.0
    %543 = vmatpush1.msra.mxu0 %v449
    %544 = vmatprep.subr.mxu0 0.0
    %545 = vmatpush1.msra.mxu0 0.0
    %546 = vmatprep.subr.mxu0 0.0
    %547 = vmatpush1.msra.mxu0 0.0
    %548 = vmatprep.subr.mxu0 0.0
    %549 = vmatpush1.msra.mxu0 0.0
    %550 = vmatprep.subr.mxu0 0.0
    %551 = vmatpush1.msra.mxu0 0.0
    %552 = vmatprep.subr.mxu0 0.0
    %553 = vmatpush1.msra.mxu0 0.0
    %554 = vmatprep.subr.mxu0 0.0
    %555 = vmatpush1.msra.mxu0 0.0
    %556 = vmatprep.subr.mxu0 0.0
    %557 = vmatpush1.msra.mxu0 0.0
    %558 = vmatprep.subr.mxu0 0.0
    %559 = vmatpush1.msra.mxu0 0.0
    %560 = vmatprep.subr.mxu0 0.0
    %561 = vmatpush1.msra.mxu0 0.0
    %562 = vmatprep.subr.mxu0 0.0
    %563 = vmatpush1.msra.mxu0 0.0
    %564 = vmatprep.subr.mxu0 0.0
    %565 = vmatpush1.msra.mxu0 0.0
    %566 = vmatprep.subr.mxu0 0.0
    %567 = vmatpush1.msra.mxu0 0.0
    %568 = vmatprep.subr.mxu0 0.0
    %569 = vmatpush1.msra.mxu0 0.0
    %570 = vmatprep.subr.mxu0 0.0
    %571 = vmatpush1.msra.mxu0 0.0
    %572 = vmatprep.subr.mxu0 0.0
    %573 = vmatpush1.msra.mxu0 0.0
    %574 = vmatprep.subr.mxu0 0.0
    %575 = vmatpush1.msra.mxu0 0.0
    %576 = vmatprep.subr.mxu0 0.0
    %577 = vmatpush1.msra.mxu0 0.0
    %578 = vmatprep.subr.mxu0 0.0
    %579 = vmatpush1.msra.mxu0 0.0
    %580 = vmatprep.subr.mxu0 0.0
    %581 = vmatpush1.msra.mxu0 0.0
    %582 = vmatprep.subr.mxu0 0.0
    %583 = vmatpush1.msra.mxu0 0.0
    %584 = vmatprep.subr.mxu0 0.0
    %585 = vmatpush1.msra.mxu0 0.0
    %586 = vmatprep.subr.mxu0 0.0
    %587 = vmatpush1.msra.mxu0 0.0
    %588 = vmatprep.subr.mxu0 0.0
    %589 = vmatpush1.msra.mxu0 0.0
    %590 = vmatprep.subr.mxu0 0.0
    %591 = vmatpush1.msra.mxu0 0.0
    %592 = vmatprep.subr.mxu0 0.0
    %593 = vmatpush1.msra.mxu0 0.0
    %594 = vmatprep.subr.mxu0 0.0
    %595 = vmatpush1.msra.mxu0 0.0
    %596 = vmatprep.subr.mxu0 0.0
    %597 = vmatpush1.msra.mxu0 0.0
    %598 = vmatprep.subr.mxu0 0.0
    %599 = vmatpush1.msra.mxu0 0.0
    %600 = vmatprep.mubr.f32.mxu0 0.0
    %601 = vmatmul.mubr.f32.gmra.mrb[0].mxu0 %v464
    %v602 = vpop.f32.mrb[0].mxu0
    %v603 = vadd.f32 0.0, %v602
    %v604 = vpop.f32.mrb[0].mxu0
    %605 = vdwg.mxu0
    %v606 = vld [vmem:[#allocation2] sm:$0xff]
    %v607 = vadd.f32 %v606, %v533
    %v608 = vxor.u32 %v607, 2147483648
    %v609 = vmul.f32 %v608, 1.442695
    %v610 = vpow.pop %v609
    %v611 = vadd.f32 %v610, 1.0
    %v612 = vrcp.pop %v611
    %v613 = vmul.f32 1.0, %v612
    %v614 = vld [vmem:[#allocation3] sm:$0xff]
    %v615 = vadd.f32 %v614, %v603
    %v616 = vxor.u32 %v615, 2147483648
    %v617 = vmul.f32 %v616, 1.442695
    %v618 = vpow.pop %v617
    %v619 = vadd.f32 %v618, 1.0
    %v620 = vrcp.pop %v619
    %v621 = vmul.f32 1.0, %v620
    %v622 = vld [vmem:[#allocation4] sm:$0xff]
    %623 = vmatprep.subr.mxu0 0.0
    %624 = vmatpush1.msra.mxu0 %v451
    %625 = vmatprep.subr.mxu0 0.0
    %626 = vmatpush1.msra.mxu0 %v452
    %627 = vmatprep.subr.mxu0 0.0
    %628 = vmatpush1.msra.mxu0 %v453
    %629 = vmatprep.subr.mxu0 0.0
    %630 = vmatpush1.msra.mxu0 %v454
    %631 = vmatprep.subr.mxu0 0.0
    %632 = vmatpush1.msra.mxu0 0.0
    %633 = vmatprep.subr.mxu0 0.0
    %634 = vmatpush1.msra.mxu0 0.0
    %635 = vmatprep.subr.mxu0 0.0
    %636 = vmatpush1.msra.mxu0 0.0
    %637 = vmatprep.subr.mxu0 0.0
    %638 = vmatpush1.msra.mxu0 0.0
    %639 = vmatprep.subr.mxu0 0.0
    %640 = vmatpush1.msra.mxu0 0.0
    %641 = vmatprep.subr.mxu0 0.0
    %642 = vmatpush1.msra.mxu0 0.0
    %643 = vmatprep.subr.mxu0 0.0
    %644 = vmatpush1.msra.mxu0 0.0
    %645 = vmatprep.subr.mxu0 0.0
    %646 = vmatpush1.msra.mxu0 0.0
    %647 = vmatprep.subr.mxu0 0.0
    %648 = vmatpush1.msra.mxu0 0.0
    %649 = vmatprep.subr.mxu0 0.0
    %650 = vmatpush1.msra.mxu0 0.0
    %651 = vmatprep.subr.mxu0 0.0
    %652 = vmatpush1.msra.mxu0 0.0
    %653 = vmatprep.subr.mxu0 0.0
    %654 = vmatpush1.msra.mxu0 0.0
    %655 = vmatprep.subr.mxu0 0.0
    %656 = vmatpush1.msra.mxu0 0.0
    %657 = vmatprep.subr.mxu0 0.0
    %658 = vmatpush1.msra.mxu0 0.0
    %659 = vmatprep.subr.mxu0 0.0
    %660 = vmatpush1.msra.mxu0 0.0
    %661 = vmatprep.subr.mxu0 0.0
    %662 = vmatpush1.msra.mxu0 0.0
    %663 = vmatprep.subr.mxu0 0.0
    %664 = vmatpush1.msra.mxu0 0.0
    %665 = vmatprep.subr.mxu0 0.0
    %666 = vmatpush1.msra.mxu0 0.0
    %667 = vmatprep.subr.mxu0 0.0
    %668 = vmatpush1.msra.mxu0 0.0
    %669 = vmatprep.subr.mxu0 0.0
    %670 = vmatpush1.msra.mxu0 0.0
    %671 = vmatprep.subr.mxu0 0.0
    %672 = vmatpush1.msra.mxu0 0.0
    %673 = vmatprep.subr.mxu0 0.0
    %674 = vmatpush1.msra.mxu0 0.0
    %675 = vmatprep.subr.mxu0 0.0
    %676 = vmatpush1.msra.mxu0 0.0
    %677 = vmatprep.subr.mxu0 0.0
    %678 = vmatpush1.msra.mxu0 0.0
    %679 = vmatprep.subr.mxu0 0.0
    %680 = vmatpush1.msra.mxu0 0.0
    %681 = vmatprep.subr.mxu0 0.0
    %682 = vmatpush1.msra.mxu0 0.0
    %683 = vmatprep.subr.mxu0 0.0
    %684 = vmatpush1.msra.mxu0 0.0
    %685 = vmatprep.subr.mxu0 0.0
    %686 = vmatpush1.msra.mxu0 0.0
    %687 = vmatprep.mubr.f32.mxu0 0.0
    %688 = vmatmul.mubr.f32.gmra.mrb[0].mxu0 %v464
    %v689 = vpop.f32.mrb[0].mxu0
    %v690 = vadd.f32 %v460, %v689
    %v691 = vpop.f32.mrb[0].mxu0
    %692 = vdwg.mxu0
    %v693 = vmul.f32 %v613, %v690
    %v694 = vadd.f32 %v622, %v693
    %v695 = vtanh.pop %v694
    %v696 = vsub.f32 %v462, %v695
    %v697 = vmul.f32 %v621, %v696
    %v698 = vadd.f32 %v695, %v697
    %699 = vst.msk [vmem:[%s6] sm:$0xff] %vm184, %v698
    %v701 = vsel %vm184, %v698, 0
    %703 = vmatprep.subr.mxu0 0.0
    %704 = vmatpush1.msra.mxu0 %v441
    %705 = vmatprep.subr.mxu0 0.0
    %706 = vmatpush1.msra.mxu0 %v442
    %707 = vmatprep.subr.mxu0 0.0
    %708 = vmatpush1.msra.mxu0 %v443
    %709 = vmatprep.subr.mxu0 0.0
    %710 = vmatpush1.msra.mxu0 %v444
    %711 = vmatprep.subr.mxu0 0.0
    %712 = vmatpush1.msra.mxu0 0.0
    %713 = vmatprep.subr.mxu0 0.0
    %714 = vmatpush1.msra.mxu0 0.0
    %715 = vmatprep.subr.mxu0 0.0
    %716 = vmatpush1.msra.mxu0 0.0
    %717 = vmatprep.subr.mxu0 0.0
    %718 = vmatpush1.msra.mxu0 0.0
    %719 = vmatprep.subr.mxu0 0.0
    %720 = vmatpush1.msra.mxu0 0.0
    %721 = vmatprep.subr.mxu0 0.0
    %722 = vmatpush1.msra.mxu0 0.0
    %723 = vmatprep.subr.mxu0 0.0
    %724 = vmatpush1.msra.mxu0 0.0
    %725 = vmatprep.subr.mxu0 0.0
    %726 = vmatpush1.msra.mxu0 0.0
    %727 = vmatprep.subr.mxu0 0.0
    %728 = vmatpush1.msra.mxu0 0.0
    %729 = vmatprep.subr.mxu0 0.0
    %730 = vmatpush1.msra.mxu0 0.0
    %731 = vmatprep.subr.mxu0 0.0
    %732 = vmatpush1.msra.mxu0 0.0
    %733 = vmatprep.subr.mxu0 0.0
    %734 = vmatpush1.msra.mxu0 0.0
    %735 = vmatprep.subr.mxu0 0.0
    %736 = vmatpush1.msra.mxu0 0.0
    %737 = vmatprep.subr.mxu0 0.0
    %738 = vmatpush1.msra.mxu0 0.0
    %739 = vmatprep.subr.mxu0 0.0
    %740 = vmatpush1.msra.mxu0 0.0
    %741 = vmatprep.subr.mxu0 0.0
    %742 = vmatpush1.msra.mxu0 0.0
    %743 = vmatprep.subr.mxu0 0.0
    %744 = vmatpush1.msra.mxu0 0.0
    %745 = vmatprep.subr.mxu0 0.0
    %746 = vmatpush1.msra.mxu0 0.0
    %747 = vmatprep.subr.mxu0 0.0
    %748 = vmatpush1.msra.mxu0 0.0
    %749 = vmatprep.subr.mxu0 0.0
    %750 = vmatpush1.msra.mxu0 0.0
    %751 = vmatprep.subr.mxu0 0.0
    %752 = vmatpush1.msra.mxu0 0.0
    %753 = vmatprep.subr.mxu0 0.0
    %754 = vmatpush1.msra.mxu0 0.0
    %755 = vmatprep.subr.mxu0 0.0
    %756 = vmatpush1.msra.mxu0 0.0
    %757 = vmatprep.subr.mxu0 0.0
    %758 = vmatpush1.msra.mxu0 0.0
    %759 = vmatprep.subr.mxu0 0.0
    %760 = vmatpush1.msra.mxu0 0.0
    %761 = vmatprep.subr.mxu0 0.0
    %762 = vmatpush1.msra.mxu0 0.0
    %763 = vmatprep.subr.mxu0 0.0
    %764 = vmatpush1.msra.mxu0 0.0
    %765 = vmatprep.subr.mxu0 0.0
    %766 = vmatpush1.msra.mxu0 0.0
    %767 = vmatprep.mubr.f32.mxu0 0.0
    %768 = vmatmul.mubr.f32.gmra.mrb[0].mxu0 %v701
    %v769 = vpop.f32.mrb[0].mxu0
    %v770 = vadd.f32 0.0, %v769
    %v771 = vpop.f32.mrb[0].mxu0
    %772 = vdwg.mxu0
    %773 = vmatprep.subr.mxu0 0.0
    %774 = vmatpush1.msra.mxu0 %v446
    %775 = vmatprep.subr.mxu0 0.0
    %776 = vmatpush1.msra.mxu0 %v447
    %777 = vmatprep.subr.mxu0 0.0
    %778 = vmatpush1.msra.mxu0 %v448
    %779 = vmatprep.subr.mxu0 0.0
    %780 = vmatpush1.msra.mxu0 %v449
    %781 = vmatprep.subr.mxu0 0.0
    %782 = vmatpush1.msra.mxu0 0.0
    %783 = vmatprep.subr.mxu0 0.0
    %784 = vmatpush1.msra.mxu0 0.0
    %785 = vmatprep.subr.mxu0 0.0
    %786 = vmatpush1.msra.mxu0 0.0
    %787 = vmatprep.subr.mxu0 0.0
    %788 = vmatpush1.msra.mxu0 0.0
    %789 = vmatprep.subr.mxu0 0.0
    %790 = vmatpush1.msra.mxu0 0.0
    %791 = vmatprep.subr.mxu0 0.0
    %792 = vmatpush1.msra.mxu0 0.0
    %793 = vmatprep.subr.mxu0 0.0
    %794 = vmatpush1.msra.mxu0 0.0
    %795 = vmatprep.subr.mxu0 0.0
    %796 = vmatpush1.msra.mxu0 0.0
    %797 = vmatprep.subr.mxu0 0.0
    %798 = vmatpush1.msra.mxu0 0.0
    %799 = vmatprep.subr.mxu0 0.0
    %800 = vmatpush1.msra.mxu0 0.0
    %801 = vmatprep.subr.mxu0 0.0
    %802 = vmatpush1.msra.mxu0 0.0
    %803 = vmatprep.subr.mxu0 0.0
    %804 = vmatpush1.msra.mxu0 0.0
    %805 = vmatprep.subr.mxu0 0.0
    %806 = vmatpush1.msra.mxu0 0.0
    %807 = vmatprep.subr.mxu0 0.0
    %808 = vmatpush1.msra.mxu0 0.0
    %809 = vmatprep.subr.mxu0 0.0
    %810 = vmatpush1.msra.mxu0 0.0
    %811 = vmatprep.subr.mxu0 0.0
    %812 = vmatpush1.msra.mxu0 0.0
    %813 = vmatprep.subr.mxu0 0.0
    %814 = vmatpush1.msra.mxu0 0.0
    %815 = vmatprep.subr.mxu0 0.0
    %816 = vmatpush1.msra.mxu0 0.0
    %817 = vmatprep.subr.mxu0 0.0
    %818 = vmatpush1.msra.mxu0 0.0
    %819 = vmatprep.subr.mxu0 0.0
    %820 = vmatpush1.msra.mxu0 0.0
    %821 = vmatprep.subr.mxu0 0.0
    %822 = vmatpush1.msra.mxu0 0.0
    %823 = vmatprep.subr.mxu0 0.0
    %824 = vmatpush1.msra.mxu0 0.0
    %825 = vmatprep.subr.mxu0 0.0
    %826 = vmatpush1.msra.mxu0 0.0
    %827 = vmatprep.subr.mxu0 0.0
    %828 = vmatpush1.msra.mxu0 0.0
    %829 = vmatprep.subr.mxu0 0.0
    %830 = vmatpush1.msra.mxu0 0.0
    %831 = vmatprep.subr.mxu0 0.0
    %832 = vmatpush1.msra.mxu0 0.0
    %833 = vmatprep.subr.mxu0 0.0
    %834 = vmatpush1.msra.mxu0 0.0
    %835 = vmatprep.subr.mxu0 0.0
    %836 = vmatpush1.msra.mxu0 0.0
    %837 = vmatprep.mubr.f32.mxu0 0.0
    %838 = vmatmul.mubr.f32.gmra.mrb[0].mxu0 %v701
    %v839 = vpop.f32.mrb[0].mxu0
    %v840 = vadd.f32 0.0, %v839
    %v841 = vpop.f32.mrb[0].mxu0
    %842 = vdwg.mxu0
    %s843 = scalar_lea.vmem [#allocation2], 8
    %v844 = vld [vmem:[%s843] sm:$0xff]
    %v845 = vadd.f32 %v844, %v770
    %v846 = vxor.u32 %v845, 2147483648
    %v847 = vmul.f32 %v846, 1.442695
    %v848 = vpow.pop %v847
    %v849 = vadd.f32 %v848, 1.0
    %v850 = vrcp.pop %v849
    %v851 = vmul.f32 1.0, %v850
    %s852 = scalar_lea.vmem [#allocation3], 8
    %v853 = vld [vmem:[%s852] sm:$0xff]
    %v854 = vadd.f32 %v853, %v840
    %v855 = vxor.u32 %v854, 2147483648
    %v856 = vmul.f32 %v855, 1.442695
    %v857 = vpow.pop %v856
    %v858 = vadd.f32 %v857, 1.0
    %v859 = vrcp.pop %v858
    %v860 = vmul.f32 1.0, %v859
    %s861 = scalar_lea.vmem [#allocation4], 8
    %v862 = vld [vmem:[%s861] sm:$0xff]
    %863 = vmatprep.subr.mxu0 0.0
    %864 = vmatpush1.msra.mxu0 %v451
    %865 = vmatprep.subr.mxu0 0.0
    %866 = vmatpush1.msra.mxu0 %v452
    %867 = vmatprep.subr.mxu0 0.0
    %868 = vmatpush1.msra.mxu0 %v453
    %869 = vmatprep.subr.mxu0 0.0
    %870 = vmatpush1.msra.mxu0 %v454
    %871 = vmatprep.subr.mxu0 0.0
    %872 = vmatpush1.msra.mxu0 0.0
    %873 = vmatprep.subr.mxu0 0.0
    %874 = vmatpush1.msra.mxu0 0.0
    %875 = vmatprep.subr.mxu0 0.0
    %876 = vmatpush1.msra.mxu0 0.0
    %877 = vmatprep.subr.mxu0 0.0
    %878 = vmatpush1.msra.mxu0 0.0
    %879 = vmatprep.subr.mxu0 0.0
    %880 = vmatpush1.msra.mxu0 0.0
    %881 = vmatprep.subr.mxu0 0.0
    %882 = vmatpush1.msra.mxu0 0.0
    %883 = vmatprep.subr.mxu0 0.0
    %884 = vmatpush1.msra.mxu0 0.0
    %885 = vmatprep.subr.mxu0 0.0
    %886 = vmatpush1.msra.mxu0 0.0
    %887 = vmatprep.subr.mxu0 0.0
    %888 = vmatpush1.msra.mxu0 0.0
    %889 = vmatprep.subr.mxu0 0.0
    %890 = vmatpush1.msra.mxu0 0.0
    %891 = vmatprep.subr.mxu0 0.0
    %892 = vmatpush1.msra.mxu0 0.0
    %893 = vmatprep.subr.mxu0 0.0
    %894 = vmatpush1.msra.mxu0 0.0
    %895 = vmatprep.subr.mxu0 0.0
    %896 = vmatpush1.msra.mxu0 0.0
    %897 = vmatprep.subr.mxu0 0.0
    %898 = vmatpush1.msra.mxu0 0.0
    %899 = vmatprep.subr.mxu0 0.0
    %900 = vmatpush1.msra.mxu0 0.0
    %901 = vmatprep.subr.mxu0 0.0
    %902 = vmatpush1.msra.mxu0 0.0
    %903 = vmatprep.subr.mxu0 0.0
    %904 = vmatpush1.msra.mxu0 0.0
    %905 = vmatprep.subr.mxu0 0.0
    %906 = vmatpush1.msra.mxu0 0.0
    %907 = vmatprep.subr.mxu0 0.0
    %908 = vmatpush1.msra.mxu0 0.0
    %909 = vmatprep.subr.mxu0 0.0
    %910 = vmatpush1.msra.mxu0 0.0
    %911 = vmatprep.subr.mxu0 0.0
    %912 = vmatpush1.msra.mxu0 0.0
    %913 = vmatprep.subr.mxu0 0.0
    %914 = vmatpush1.msra.mxu0 0.0
    %915 = vmatprep.subr.mxu0 0.0
    %916 = vmatpush1.msra.mxu0 0.0
    %917 = vmatprep.subr.mxu0 0.0
    %918 = vmatpush1.msra.mxu0 0.0
    %919 = vmatprep.subr.mxu0 0.0
    %920 = vmatpush1.msra.mxu0 0.0
    %921 = vmatprep.subr.mxu0 0.0
    %922 = vmatpush1.msra.mxu0 0.0
    %923 = vmatprep.subr.mxu0 0.0
    %924 = vmatpush1.msra.mxu0 0.0
    %925 = vmatprep.subr.mxu0 0.0
    %926 = vmatpush1.msra.mxu0 0.0
    %927 = vmatprep.mubr.f32.mxu0 0.0
    %928 = vmatmul.mubr.f32.gmra.mrb[0].mxu0 %v701
    %v929 = vpop.f32.mrb[0].mxu0
    %v930 = vadd.f32 %v460, %v929
    %v931 = vpop.f32.mrb[0].mxu0
    %932 = vdwg.mxu0
    %v933 = vmul.f32 %v851, %v930
    %v934 = vadd.f32 %v862, %v933
    %v935 = vtanh.pop %v934
    %v936 = vsub.f32 %v698, %v935
    %v937 = vmul.f32 %v860, %v936
    %v938 = vadd.f32 %v935, %v937
    %s939 = scalar_lea.vmem %s6, 8
    %940 = vst.msk [vmem:[%s939] sm:$0xff] %vm184, %v938
    %v942 = vsel %vm184, %v938, 0
    %944 = vmatprep.subr.mxu0 0.0
    %945 = vmatpush1.msra.mxu0 %v441
    %946 = vmatprep.subr.mxu0 0.0
    %947 = vmatpush1.msra.mxu0 %v442
    %948 = vmatprep.subr.mxu0 0.0
    %949 = vmatpush1.msra.mxu0 %v443
    %950 = vmatprep.subr.mxu0 0.0
    %951 = vmatpush1.msra.mxu0 %v444
    %952 = vmatprep.subr.mxu0 0.0
    %953 = vmatpush1.msra.mxu0 0.0
    %954 = vmatprep.subr.mxu0 0.0
    %955 = vmatpush1.msra.mxu0 0.0
    %956 = vmatprep.subr.mxu0 0.0
    %957 = vmatpush1.msra.mxu0 0.0
    %958 = vmatprep.subr.mxu0 0.0
    %959 = vmatpush1.msra.mxu0 0.0
    %960 = vmatprep.subr.mxu0 0.0
    %961 = vmatpush1.msra.mxu0 0.0
    %962 = vmatprep.subr.mxu0 0.0
    %963 = vmatpush1.msra.mxu0 0.0
    %964 = vmatprep.subr.mxu0 0.0
    %965 = vmatpush1.msra.mxu0 0.0
    %966 = vmatprep.subr.mxu0 0.0
    %967 = vmatpush1.msra.mxu0 0.0
    %968 = vmatprep.subr.mxu0 0.0
    %969 = vmatpush1.msra.mxu0 0.0
    %970 = vmatprep.subr.mxu0 0.0
    %971 = vmatpush1.msra.mxu0 0.0
    %972 = vmatprep.subr.mxu0 0.0
    %973 = vmatpush1.msra.mxu0 0.0
    %974 = vmatprep.subr.mxu0 0.0
    %975 = vmatpush1.msra.mxu0 0.0
    %976 = vmatprep.subr.mxu0 0.0
    %977 = vmatpush1.msra.mxu0 0.0
    %978 = vmatprep.subr.mxu0 0.0
    %979 = vmatpush1.msra.mxu0 0.0
    %980 = vmatprep.subr.mxu0 0.0
    %981 = vmatpush1.msra.mxu0 0.0
    %982 = vmatprep.subr.mxu0 0.0
    %983 = vmatpush1.msra.mxu0 0.0
    %984 = vmatprep.subr.mxu0 0.0
    %985 = vmatpush1.msra.mxu0 0.0
    %986 = vmatprep.subr.mxu0 0.0
    %987 = vmatpush1.msra.mxu0 0.0
    %988 = vmatprep.subr.mxu0 0.0
    %989 = vmatpush1.msra.mxu0 0.0
    %990 = vmatprep.subr.mxu0 0.0
    %991 = vmatpush1.msra.mxu0 0.0
    %992 = vmatprep.subr.mxu0 0.0
    %993 = vmatpush1.msra.mxu0 0.0
    %994 = vmatprep.subr.mxu0 0.0
    %995 = vmatpush1.msra.mxu0 0.0
    %996 = vmatprep.subr.mxu0 0.0
    %997 = vmatpush1.msra.mxu0 0.0
    %998 = vmatprep.subr.mxu0 0.0
    %999 = vmatpush1.msra.mxu0 0.0
    %1000 = vmatprep.subr.mxu0 0.0
    %1001 = vmatpush1.msra.mxu0 0.0
    %1002 = vmatprep.subr.mxu0 0.0
    %1003 = vmatpush1.msra.mxu0 0.0
    %1004 = vmatprep.subr.mxu0 0.0
    %1005 = vmatpush1.msra.mxu0 0.0
    %1006 = vmatprep.subr.mxu0 0.0
    %1007 = vmatpush1.msra.mxu0 0.0
    %1008 = vmatprep.mubr.f32.mxu0 0.0
    %1009 = vmatmul.mubr.f32.gmra.mrb[0].mxu0 %v942
    %v1010 = vpop.f32.mrb[0].mxu0
    %v1011 = vadd.f32 0.0, %v1010
    %v1012 = vpop.f32.mrb[0].mxu0
    %1013 = vdwg.mxu0
    %1014 = vmatprep.subr.mxu0 0.0
    %1015 = vmatpush1.msra.mxu0 %v446
    %1016 = vmatprep.subr.mxu0 0.0
    %1017 = vmatpush1.msra.mxu0 %v447
    %1018 = vmatprep.subr.mxu0 0.0
    %1019 = vmatpush1.msra.mxu0 %v448
    %1020 = vmatprep.subr.mxu0 0.0
    %1021 = vmatpush1.msra.mxu0 %v449
    %1022 = vmatprep.subr.mxu0 0.0
    %1023 = vmatpush1.msra.mxu0 0.0
    %1024 = vmatprep.subr.mxu0 0.0
    %1025 = vmatpush1.msra.mxu0 0.0
    %1026 = vmatprep.subr.mxu0 0.0
    %1027 = vmatpush1.msra.mxu0 0.0
    %1028 = vmatprep.subr.mxu0 0.0
    %1029 = vmatpush1.msra.mxu0 0.0
    %1030 = vmatprep.subr.mxu0 0.0
    %1031 = vmatpush1.msra.mxu0 0.0
    %1032 = vmatprep.subr.mxu0 0.0
    %1033 = vmatpush1.msra.mxu0 0.0
    %1034 = vmatprep.subr.mxu0 0.0
    %1035 = vmatpush1.msra.mxu0 0.0
    %1036 = vmatprep.subr.mxu0 0.0
    %1037 = vmatpush1.msra.mxu0 0.0
    %1038 = vmatprep.subr.mxu0 0.0
    %1039 = vmatpush1.msra.mxu0 0.0
    %1040 = vmatprep.subr.mxu0 0.0
    %1041 = vmatpush1.msra.mxu0 0.0
    %1042 = vmatprep.subr.mxu0 0.0
    %1043 = vmatpush1.msra.mxu0 0.0
    %1044 = vmatprep.subr.mxu0 0.0
    %1045 = vmatpush1.msra.mxu0 0.0
    %1046 = vmatprep.subr.mxu0 0.0
    %1047 = vmatpush1.msra.mxu0 0.0
    %1048 = vmatprep.subr.mxu0 0.0
    %1049 = vmatpush1.msra.mxu0 0.0
    %1050 = vmatprep.subr.mxu0 0.0
    %1051 = vmatpush1.msra.mxu0 0.0
    %1052 = vmatprep.subr.mxu0 0.0
    %1053 = vmatpush1.msra.mxu0 0.0
    %1054 = vmatprep.subr.mxu0 0.0
    %1055 = vmatpush1.msra.mxu0 0.0
    %1056 = vmatprep.subr.mxu0 0.0
    %1057 = vmatpush1.msra.mxu0 0.0
    %1058 = vmatprep.subr.mxu0 0.0
    %1059 = vmatpush1.msra.mxu0 0.0
    %1060 = vmatprep.subr.mxu0 0.0
    %1061 = vmatpush1.msra.mxu0 0.0
    %1062 = vmatprep.subr.mxu0 0.0
    %1063 = vmatpush1.msra.mxu0 0.0
    %1064 = vmatprep.subr.mxu0 0.0
    %1065 = vmatpush1.msra.mxu0 0.0
    %1066 = vmatprep.subr.mxu0 0.0
    %1067 = vmatpush1.msra.mxu0 0.0
    %1068 = vmatprep.subr.mxu0 0.0
    %1069 = vmatpush1.msra.mxu0 0.0
    %1070 = vmatprep.subr.mxu0 0.0
    %1071 = vmatpush1.msra.mxu0 0.0
    %1072 = vmatprep.subr.mxu0 0.0
    %1073 = vmatpush1.msra.mxu0 0.0
    %1074 = vmatprep.subr.mxu0 0.0
    %1075 = vmatpush1.msra.mxu0 0.0
    %1076 = vmatprep.subr.mxu0 0.0
    %1077 = vmatpush1.msra.mxu0 0.0
    %1078 = vmatprep.mubr.f32.mxu0 0.0
    %1079 = vmatmul.mubr.f32.gmra.mrb[0].mxu0 %v942
    %v1080 = vpop.f32.mrb[0].mxu0
    %v1081 = vadd.f32 0.0, %v1080
    %v1082 = vpop.f32.mrb[0].mxu0
    %1083 = vdwg.mxu0
    %s1084 = scalar_lea.vmem [#allocation2], 16
    %v1085 = vld [vmem:[%s1084] sm:$0xff]
    %v1086 = vadd.f32 %v1085, %v1011
    %v1087 = vxor.u32 %v1086, 2147483648
    %v1088 = vmul.f32 %v1087, 1.442695
    %v1089 = vpow.pop %v1088
    %v1090 = vadd.f32 %v1089, 1.0
    %v1091 = vrcp.pop %v1090
    %v1092 = vmul.f32 1.0, %v1091
    %s1093 = scalar_lea.vmem [#allocation3], 16
    %v1094 = vld [vmem:[%s1093] sm:$0xff]
    %v1095 = vadd.f32 %v1094, %v1081
    %v1096 = vxor.u32 %v1095, 2147483648
    %v1097 = vmul.f32 %v1096, 1.442695
    %v1098 = vpow.pop %v1097
    %v1099 = vadd.f32 %v1098, 1.0
    %v1100 = vrcp.pop %v1099
    %v1101 = vmul.f32 1.0, %v1100
    %s1102 = scalar_lea.vmem [#allocation4], 16
    %v1103 = vld [vmem:[%s1102] sm:$0xff]
    %1104 = vmatprep.subr.mxu0 0.0
    %1105 = vmatpush1.msra.mxu0 %v451
    %1106 = vmatprep.subr.mxu0 0.0
    %1107 = vmatpush1.msra.mxu0 %v452
    %1108 = vmatprep.subr.mxu0 0.0
    %1109 = vmatpush1.msra.mxu0 %v453
    %1110 = vmatprep.subr.mxu0 0.0
    %1111 = vmatpush1.msra.mxu0 %v454
    %1112 = vmatprep.subr.mxu0 0.0
    %1113 = vmatpush1.msra.mxu0 0.0
    %1114 = vmatprep.subr.mxu0 0.0
    %1115 = vmatpush1.msra.mxu0 0.0
    %1116 = vmatprep.subr.mxu0 0.0
    %1117 = vmatpush1.msra.mxu0 0.0
    %1118 = vmatprep.subr.mxu0 0.0
    %1119 = vmatpush1.msra.mxu0 0.0
    %1120 = vmatprep.subr.mxu0 0.0
    %1121 = vmatpush1.msra.mxu0 0.0
    %1122 = vmatprep.subr.mxu0 0.0
    %1123 = vmatpush1.msra.mxu0 0.0
    %1124 = vmatprep.subr.mxu0 0.0
    %1125 = vmatpush1.msra.mxu0 0.0
    %1126 = vmatprep.subr.mxu0 0.0
    %1127 = vmatpush1.msra.mxu0 0.0
    %1128 = vmatprep.subr.mxu0 0.0
    %1129 = vmatpush1.msra.mxu0 0.0
    %1130 = vmatprep.subr.mxu0 0.0
    %1131 = vmatpush1.msra.mxu0 0.0
    %1132 = vmatprep.subr.mxu0 0.0
    %1133 = vmatpush1.msra.mxu0 0.0
    %1134 = vmatprep.subr.mxu0 0.0
    %1135 = vmatpush1.msra.mxu0 0.0
    %1136 = vmatprep.subr.mxu0 0.0
    %1137 = vmatpush1.msra.mxu0 0.0
    %1138 = vmatprep.subr.mxu0 0.0
    %1139 = vmatpush1.msra.mxu0 0.0
    %1140 = vmatprep.subr.mxu0 0.0
    %1141 = vmatpush1.msra.mxu0 0.0
    %1142 = vmatprep.subr.mxu0 0.0
    %1143 = vmatpush1.msra.mxu0 0.0
    %1144 = vmatprep.subr.mxu0 0.0
    %1145 = vmatpush1.msra.mxu0 0.0
    %1146 = vmatprep.subr.mxu0 0.0
    %1147 = vmatpush1.msra.mxu0 0.0
    %1148 = vmatprep.subr.mxu0 0.0
    %1149 = vmatpush1.msra.mxu0 0.0
    %1150 = vmatprep.subr.mxu0 0.0
    %1151 = vmatpush1.msra.mxu0 0.0
    %1152 = vmatprep.subr.mxu0 0.0
    %1153 = vmatpush1.msra.mxu0 0.0
    %1154 = vmatprep.subr.mxu0 0.0
    %1155 = vmatpush1.msra.mxu0 0.0
    %1156 = vmatprep.subr.mxu0 0.0
    %1157 = vmatpush1.msra.mxu0 0.0
    %1158 = vmatprep.subr.mxu0 0.0
    %1159 = vmatpush1.msra.mxu0 0.0
    %1160 = vmatprep.subr.mxu0 0.0
    %1161 = vmatpush1.msra.mxu0 0.0
    %1162 = vmatprep.subr.mxu0 0.0
    %1163 = vmatpush1.msra.mxu0 0.0
    %1164 = vmatprep.subr.mxu0 0.0
    %1165 = vmatpush1.msra.mxu0 0.0
    %1166 = vmatprep.subr.mxu0 0.0
    %1167 = vmatpush1.msra.mxu0 0.0
    %1168 = vmatprep.mubr.f32.mxu0 0.0
    %1169 = vmatmul.mubr.f32.gmra.mrb[0].mxu0 %v942
    %v1170 = vpop.f32.mrb[0].mxu0
    %v1171 = vadd.f32 %v460, %v1170
    %v1172 = vpop.f32.mrb[0].mxu0
    %1173 = vdwg.mxu0
    %v1174 = vmul.f32 %v1092, %v1171
    %v1175 = vadd.f32 %v1103, %v1174
    %v1176 = vtanh.pop %v1175
    %v1177 = vsub.f32 %v938, %v1176
    %v1178 = vmul.f32 %v1101, %v1177
    %v1179 = vadd.f32 %v1176, %v1178
    %s1180 = scalar_lea.vmem %s6, 16
    %1181 = vst.msk [vmem:[%s1180] sm:$0xff] %vm184, %v1179
    %v1183 = vsel %vm184, %v1179, 0
    %1185 = vmatprep.subr.mxu0 0.0
    %1186 = vmatpush1.msra.mxu0 %v441
    %1187 = vmatprep.subr.mxu0 0.0
    %1188 = vmatpush1.msra.mxu0 %v442
    %1189 = vmatprep.subr.mxu0 0.0
    %1190 = vmatpush1.msra.mxu0 %v443
    %1191 = vmatprep.subr.mxu0 0.0
    %1192 = vmatpush1.msra.mxu0 %v444
    %1193 = vmatprep.subr.mxu0 0.0
    %1194 = vmatpush1.msra.mxu0 0.0
    %1195 = vmatprep.subr.mxu0 0.0
    %1196 = vmatpush1.msra.mxu0 0.0
    %1197 = vmatprep.subr.mxu0 0.0
    %1198 = vmatpush1.msra.mxu0 0.0
    %1199 = vmatprep.subr.mxu0 0.0
    %1200 = vmatpush1.msra.mxu0 0.0
    %1201 = vmatprep.subr.mxu0 0.0
    %1202 = vmatpush1.msra.mxu0 0.0
    %1203 = vmatprep.subr.mxu0 0.0
    %1204 = vmatpush1.msra.mxu0 0.0
    %1205 = vmatprep.subr.mxu0 0.0
    %1206 = vmatpush1.msra.mxu0 0.0
    %1207 = vmatprep.subr.mxu0 0.0
    %1208 = vmatpush1.msra.mxu0 0.0
    %1209 = vmatprep.subr.mxu0 0.0
    %1210 = vmatpush1.msra.mxu0 0.0
    %1211 = vmatprep.subr.mxu0 0.0
    %1212 = vmatpush1.msra.mxu0 0.0
    %1213 = vmatprep.subr.mxu0 0.0
    %1214 = vmatpush1.msra.mxu0 0.0
    %1215 = vmatprep.subr.mxu0 0.0
    %1216 = vmatpush1.msra.mxu0 0.0
    %1217 = vmatprep.subr.mxu0 0.0
    %1218 = vmatpush1.msra.mxu0 0.0
    %1219 = vmatprep.subr.mxu0 0.0
    %1220 = vmatpush1.msra.mxu0 0.0
    %1221 = vmatprep.subr.mxu0 0.0
    %1222 = vmatpush1.msra.mxu0 0.0
    %1223 = vmatprep.subr.mxu0 0.0
    %1224 = vmatpush1.msra.mxu0 0.0
    %1225 = vmatprep.subr.mxu0 0.0
    %1226 = vmatpush1.msra.mxu0 0.0
    %1227 = vmatprep.subr.mxu0 0.0
    %1228 = vmatpush1.msra.mxu0 0.0
    %1229 = vmatprep.subr.mxu0 0.0
    %1230 = vmatpush1.msra.mxu0 0.0
    %1231 = vmatprep.subr.mxu0 0.0
    %1232 = vmatpush1.msra.mxu0 0.0
    %1233 = vmatprep.subr.mxu0 0.0
    %1234 = vmatpush1.msra.mxu0 0.0
    %1235 = vmatprep.subr.mxu0 0.0
    %1236 = vmatpush1.msra.mxu0 0.0
    %1237 = vmatprep.subr.mxu0 0.0
    %1238 = vmatpush1.msra.mxu0 0.0
    %1239 = vmatprep.subr.mxu0 0.0
    %1240 = vmatpush1.msra.mxu0 0.0
    %1241 = vmatprep.subr.mxu0 0.0
    %1242 = vmatpush1.msra.mxu0 0.0
    %1243 = vmatprep.subr.mxu0 0.0
    %1244 = vmatpush1.msra.mxu0 0.0
    %1245 = vmatprep.subr.mxu0 0.0
    %1246 = vmatpush1.msra.mxu0 0.0
    %1247 = vmatprep.subr.mxu0 0.0
    %1248 = vmatpush1.msra.mxu0 0.0
    %1249 = vmatprep.mubr.f32.mxu0 0.0
    %1250 = vmatmul.mubr.f32.gmra.mrb[0].mxu0 %v1183
    %v1251 = vpop.f32.mrb[0].mxu0
    %v1252 = vadd.f32 0.0, %v1251
    %v1253 = vpop.f32.mrb[0].mxu0
    %1254 = vdwg.mxu0
    %1255 = vmatprep.subr.mxu0 0.0
    %1256 = vmatpush1.msra.mxu0 %v446
    %1257 = vmatprep.subr.mxu0 0.0
    %1258 = vmatpush1.msra.mxu0 %v447
    %1259 = vmatprep.subr.mxu0 0.0
    %1260 = vmatpush1.msra.mxu0 %v448
    %1261 = vmatprep.subr.mxu0 0.0
    %1262 = vmatpush1.msra.mxu0 %v449
    %1263 = vmatprep.subr.mxu0 0.0
    %1264 = vmatpush1.msra.mxu0 0.0
    %1265 = vmatprep.subr.mxu0 0.0
    %1266 = vmatpush1.msra.mxu0 0.0
    %1267 = vmatprep.subr.mxu0 0.0
    %1268 = vmatpush1.msra.mxu0 0.0
    %1269 = vmatprep.subr.mxu0 0.0
    %1270 = vmatpush1.msra.mxu0 0.0
    %1271 = vmatprep.subr.mxu0 0.0
    %1272 = vmatpush1.msra.mxu0 0.0
    %1273 = vmatprep.subr.mxu0 0.0
    %1274 = vmatpush1.msra.mxu0 0.0
    %1275 = vmatprep.subr.mxu0 0.0
    %1276 = vmatpush1.msra.mxu0 0.0
    %1277 = vmatprep.subr.mxu0 0.0
    %1278 = vmatpush1.msra.mxu0 0.0
    %1279 = vmatprep.subr.mxu0 0.0
    %1280 = vmatpush1.msra.mxu0 0.0
    %1281 = vmatprep.subr.mxu0 0.0
    %1282 = vmatpush1.msra.mxu0 0.0
    %1283 = vmatprep.subr.mxu0 0.0
    %1284 = vmatpush1.msra.mxu0 0.0
    %1285 = vmatprep.subr.mxu0 0.0
    %1286 = vmatpush1.msra.mxu0 0.0
    %1287 = vmatprep.subr.mxu0 0.0
    %1288 = vmatpush1.msra.mxu0 0.0
    %1289 = vmatprep.subr.mxu0 0.0
    %1290 = vmatpush1.msra.mxu0 0.0
    %1291 = vmatprep.subr.mxu0 0.0
    %1292 = vmatpush1.msra.mxu0 0.0
    %1293 = vmatprep.subr.mxu0 0.0
    %1294 = vmatpush1.msra.mxu0 0.0
    %1295 = vmatprep.subr.mxu0 0.0
    %1296 = vmatpush1.msra.mxu0 0.0
    %1297 = vmatprep.subr.mxu0 0.0
    %1298 = vmatpush1.msra.mxu0 0.0
    %1299 = vmatprep.subr.mxu0 0.0
    %1300 = vmatpush1.msra.mxu0 0.0
    %1301 = vmatprep.subr.mxu0 0.0
    %1302 = vmatpush1.msra.mxu0 0.0
    %1303 = vmatprep.subr.mxu0 0.0
    %1304 = vmatpush1.msra.mxu0 0.0
    %1305 = vmatprep.subr.mxu0 0.0
    %1306 = vmatpush1.msra.mxu0 0.0
    %1307 = vmatprep.subr.mxu0 0.0
    %1308 = vmatpush1.msra.mxu0 0.0
    %1309 = vmatprep.subr.mxu0 0.0
    %1310 = vmatpush1.msra.mxu0 0.0
    %1311 = vmatprep.subr.mxu0 0.0
    %1312 = vmatpush1.msra.mxu0 0.0
    %1313 = vmatprep.subr.mxu0 0.0
    %1314 = vmatpush1.msra.mxu0 0.0
    %1315 = vmatprep.subr.mxu0 0.0
    %1316 = vmatpush1.msra.mxu0 0.0
    %1317 = vmatprep.subr.mxu0 0.0
    %1318 = vmatpush1.msra.mxu0 0.0
    %1319 = vmatprep.mubr.f32.mxu0 0.0
    %1320 = vmatmul.mubr.f32.gmra.mrb[0].mxu0 %v1183
    %v1321 = vpop.f32.mrb[0].mxu0
    %v1322 = vadd.f32 0.0, %v1321
    %v1323 = vpop.f32.mrb[0].mxu0
    %1324 = vdwg.mxu0
    %s1325 = scalar_lea.vmem [#allocation2], 24
    %v1326 = vld [vmem:[%s1325] sm:$0xff]
    %v1327 = vadd.f32 %v1326, %v1252
    %v1328 = vxor.u32 %v1327, 2147483648
    %v1329 = vmul.f32 %v1328, 1.442695
    %v1330 = vpow.pop %v1329
    %v1331 = vadd.f32 %v1330, 1.0
    %v1332 = vrcp.pop %v1331
    %v1333 = vmul.f32 1.0, %v1332
    %s1334 = scalar_lea.vmem [#allocation3], 24
    %v1335 = vld [vmem:[%s1334] sm:$0xff]
    %v1336 = vadd.f32 %v1335, %v1322
    %v1337 = vxor.u32 %v1336, 2147483648
    %v1338 = vmul.f32 %v1337, 1.442695
    %v1339 = vpow.pop %v1338
    %v1340 = vadd.f32 %v1339, 1.0
    %v1341 = vrcp.pop %v1340
    %v1342 = vmul.f32 1.0, %v1341
    %s1343 = scalar_lea.vmem [#allocation4], 24
    %v1344 = vld [vmem:[%s1343] sm:$0xff]
    %1345 = vmatprep.subr.mxu0 0.0
    %1346 = vmatpush1.msra.mxu0 %v451
    %1347 = vmatprep.subr.mxu0 0.0
    %1348 = vmatpush1.msra.mxu0 %v452
    %1349 = vmatprep.subr.mxu0 0.0
    %1350 = vmatpush1.msra.mxu0 %v453
    %1351 = vmatprep.subr.mxu0 0.0
    %1352 = vmatpush1.msra.mxu0 %v454
    %1353 = vmatprep.subr.mxu0 0.0
    %1354 = vmatpush1.msra.mxu0 0.0
    %1355 = vmatprep.subr.mxu0 0.0
    %1356 = vmatpush1.msra.mxu0 0.0
    %1357 = vmatprep.subr.mxu0 0.0
    %1358 = vmatpush1.msra.mxu0 0.0
    %1359 = vmatprep.subr.mxu0 0.0
    %1360 = vmatpush1.msra.mxu0 0.0
    %1361 = vmatprep.subr.mxu0 0.0
    %1362 = vmatpush1.msra.mxu0 0.0
    %1363 = vmatprep.subr.mxu0 0.0
    %1364 = vmatpush1.msra.mxu0 0.0
    %1365 = vmatprep.subr.mxu0 0.0
    %1366 = vmatpush1.msra.mxu0 0.0
    %1367 = vmatprep.subr.mxu0 0.0
    %1368 = vmatpush1.msra.mxu0 0.0
    %1369 = vmatprep.subr.mxu0 0.0
    %1370 = vmatpush1.msra.mxu0 0.0
    %1371 = vmatprep.subr.mxu0 0.0
    %1372 = vmatpush1.msra.mxu0 0.0
    %1373 = vmatprep.subr.mxu0 0.0
    %1374 = vmatpush1.msra.mxu0 0.0
    %1375 = vmatprep.subr.mxu0 0.0
    %1376 = vmatpush1.msra.mxu0 0.0
    %1377 = vmatprep.subr.mxu0 0.0
    %1378 = vmatpush1.msra.mxu0 0.0
    %1379 = vmatprep.subr.mxu0 0.0
    %1380 = vmatpush1.msra.mxu0 0.0
    %1381 = vmatprep.subr.mxu0 0.0
    %1382 = vmatpush1.msra.mxu0 0.0
    %1383 = vmatprep.subr.mxu0 0.0
    %1384 = vmatpush1.msra.mxu0 0.0
    %1385 = vmatprep.subr.mxu0 0.0
    %1386 = vmatpush1.msra.mxu0 0.0
    %1387 = vmatprep.subr.mxu0 0.0
    %1388 = vmatpush1.msra.mxu0 0.0
    %1389 = vmatprep.subr.mxu0 0.0
    %1390 = vmatpush1.msra.mxu0 0.0
    %1391 = vmatprep.subr.mxu0 0.0
    %1392 = vmatpush1.msra.mxu0 0.0
    %1393 = vmatprep.subr.mxu0 0.0
    %1394 = vmatpush1.msra.mxu0 0.0
    %1395 = vmatprep.subr.mxu0 0.0
    %1396 = vmatpush1.msra.mxu0 0.0
    %1397 = vmatprep.subr.mxu0 0.0
    %1398 = vmatpush1.msra.mxu0 0.0
    %1399 = vmatprep.subr.mxu0 0.0
    %1400 = vmatpush1.msra.mxu0 0.0
    %1401 = vmatprep.subr.mxu0 0.0
    %1402 = vmatpush1.msra.mxu0 0.0
    %1403 = vmatprep.subr.mxu0 0.0
    %1404 = vmatpush1.msra.mxu0 0.0
    %1405 = vmatprep.subr.mxu0 0.0
    %1406 = vmatpush1.msra.mxu0 0.0
    %1407 = vmatprep.subr.mxu0 0.0
    %1408 = vmatpush1.msra.mxu0 0.0
    %1409 = vmatprep.mubr.f32.mxu0 0.0
    %1410 = vmatmul.mubr.f32.gmra.mrb[0].mxu0 %v1183
    %v1411 = vpop.f32.mrb[0].mxu0
    %v1412 = vadd.f32 %v460, %v1411
    %v1413 = vpop.f32.mrb[0].mxu0
    %1414 = vdwg.mxu0
    %v1415 = vmul.f32 %v1333, %v1412
    %v1416 = vadd.f32 %v1344, %v1415
    %v1417 = vtanh.pop %v1416
    %v1418 = vsub.f32 %v1179, %v1417
    %v1419 = vmul.f32 %v1342, %v1418
    %v1420 = vadd.f32 %v1417, %v1419
    %s1421 = scalar_lea.vmem %s6, 24
    %1422 = vst.msk [vmem:[%s1421] sm:$0xff] %vm184, %v1420
    %v1424 = vsel %vm184, %v1420, 0
    %1426 = vmatprep.subr.mxu0 0.0
    %1427 = vmatpush1.msra.mxu0 %v441
    %1428 = vmatprep.subr.mxu0 0.0
    %1429 = vmatpush1.msra.mxu0 %v442
    %1430 = vmatprep.subr.mxu0 0.0
    %1431 = vmatpush1.msra.mxu0 %v443
    %1432 = vmatprep.subr.mxu0 0.0
    %1433 = vmatpush1.msra.mxu0 %v444
    %1434 = vmatprep.subr.mxu0 0.0
    %1435 = vmatpush1.msra.mxu0 0.0
    %1436 = vmatprep.subr.mxu0 0.0
    %1437 = vmatpush1.msra.mxu0 0.0
    %1438 = vmatprep.subr.mxu0 0.0
    %1439 = vmatpush1.msra.mxu0 0.0
    %1440 = vmatprep.subr.mxu0 0.0
    %1441 = vmatpush1.msra.mxu0 0.0
    %1442 = vmatprep.subr.mxu0 0.0
    %1443 = vmatpush1.msra.mxu0 0.0
    %1444 = vmatprep.subr.mxu0 0.0
    %1445 = vmatpush1.msra.mxu0 0.0
    %1446 = vmatprep.subr.mxu0 0.0
    %1447 = vmatpush1.msra.mxu0 0.0
    %1448 = vmatprep.subr.mxu0 0.0
    %1449 = vmatpush1.msra.mxu0 0.0
    %1450 = vmatprep.subr.mxu0 0.0
    %1451 = vmatpush1.msra.mxu0 0.0
    %1452 = vmatprep.subr.mxu0 0.0
    %1453 = vmatpush1.msra.mxu0 0.0
    %1454 = vmatprep.subr.mxu0 0.0
    %1455 = vmatpush1.msra.mxu0 0.0
    %1456 = vmatprep.subr.mxu0 0.0
    %1457 = vmatpush1.msra.mxu0 0.0
    %1458 = vmatprep.subr.mxu0 0.0
    %1459 = vmatpush1.msra.mxu0 0.0
    %1460 = vmatprep.subr.mxu0 0.0
    %1461 = vmatpush1.msra.mxu0 0.0
    %1462 = vmatprep.subr.mxu0 0.0
    %1463 = vmatpush1.msra.mxu0 0.0
    %1464 = vmatprep.subr.mxu0 0.0
    %1465 = vmatpush1.msra.mxu0 0.0
    %1466 = vmatprep.subr.mxu0 0.0
    %1467 = vmatpush1.msra.mxu0 0.0
    %1468 = vmatprep.subr.mxu0 0.0
    %1469 = vmatpush1.msra.mxu0 0.0
    %1470 = vmatprep.subr.mxu0 0.0
    %1471 = vmatpush1.msra.mxu0 0.0
    %1472 = vmatprep.subr.mxu0 0.0
    %1473 = vmatpush1.msra.mxu0 0.0
    %1474 = vmatprep.subr.mxu0 0.0
    %1475 = vmatpush1.msra.mxu0 0.0
    %1476 = vmatprep.subr.mxu0 0.0
    %1477 = vmatpush1.msra.mxu0 0.0
    %1478 = vmatprep.subr.mxu0 0.0
    %1479 = vmatpush1.msra.mxu0 0.0
    %1480 = vmatprep.subr.mxu0 0.0
    %1481 = vmatpush1.msra.mxu0 0.0
    %1482 = vmatprep.subr.mxu0 0.0
    %1483 = vmatpush1.msra.mxu0 0.0
    %1484 = vmatprep.subr.mxu0 0.0
    %1485 = vmatpush1.msra.mxu0 0.0
    %1486 = vmatprep.subr.mxu0 0.0
    %1487 = vmatpush1.msra.mxu0 0.0
    %1488 = vmatprep.subr.mxu0 0.0
    %1489 = vmatpush1.msra.mxu0 0.0
    %1490 = vmatprep.mubr.f32.mxu0 0.0
    %1491 = vmatmul.mubr.f32.gmra.mrb[0].mxu0 %v1424
    %v1492 = vpop.f32.mrb[0].mxu0
    %v1493 = vadd.f32 0.0, %v1492
    %v1494 = vpop.f32.mrb[0].mxu0
    %1495 = vdwg.mxu0
    %1496 = vmatprep.subr.mxu0 0.0
    %1497 = vmatpush1.msra.mxu0 %v446
    %1498 = vmatprep.subr.mxu0 0.0
    %1499 = vmatpush1.msra.mxu0 %v447
    %1500 = vmatprep.subr.mxu0 0.0
    %1501 = vmatpush1.msra.mxu0 %v448
    %1502 = vmatprep.subr.mxu0 0.0
    %1503 = vmatpush1.msra.mxu0 %v449
    %1504 = vmatprep.subr.mxu0 0.0
    %1505 = vmatpush1.msra.mxu0 0.0
    %1506 = vmatprep.subr.mxu0 0.0
    %1507 = vmatpush1.msra.mxu0 0.0
    %1508 = vmatprep.subr.mxu0 0.0
    %1509 = vmatpush1.msra.mxu0 0.0
    %1510 = vmatprep.subr.mxu0 0.0
    %1511 = vmatpush1.msra.mxu0 0.0
    %1512 = vmatprep.subr.mxu0 0.0
    %1513 = vmatpush1.msra.mxu0 0.0
    %1514 = vmatprep.subr.mxu0 0.0
    %1515 = vmatpush1.msra.mxu0 0.0
    %1516 = vmatprep.subr.mxu0 0.0
    %1517 = vmatpush1.msra.mxu0 0.0
    %1518 = vmatprep.subr.mxu0 0.0
    %1519 = vmatpush1.msra.mxu0 0.0
    %1520 = vmatprep.subr.mxu0 0.0
    %1521 = vmatpush1.msra.mxu0 0.0
    %1522 = vmatprep.subr.mxu0 0.0
    %1523 = vmatpush1.msra.mxu0 0.0
    %1524 = vmatprep.subr.mxu0 0.0
    %1525 = vmatpush1.msra.mxu0 0.0
    %1526 = vmatprep.subr.mxu0 0.0
    %1527 = vmatpush1.msra.mxu0 0.0
    %1528 = vmatprep.subr.mxu0 0.0
    %1529 = vmatpush1.msra.mxu0 0.0
    %1530 = vmatprep.subr.mxu0 0.0
    %1531 = vmatpush1.msra.mxu0 0.0
    %1532 = vmatprep.subr.mxu0 0.0
    %1533 = vmatpush1.msra.mxu0 0.0
    %1534 = vmatprep.subr.mxu0 0.0
    %1535 = vmatpush1.msra.mxu0 0.0
    %1536 = vmatprep.subr.mxu0 0.0
    %1537 = vmatpush1.msra.mxu0 0.0
    %1538 = vmatprep.subr.mxu0 0.0
    %1539 = vmatpush1.msra.mxu0 0.0
    %1540 = vmatprep.subr.mxu0 0.0
    %1541 = vmatpush1.msra.mxu0 0.0
    %1542 = vmatprep.subr.mxu0 0.0
    %1543 = vmatpush1.msra.mxu0 0.0
    %1544 = vmatprep.subr.mxu0 0.0
    %1545 = vmatpush1.msra.mxu0 0.0
    %1546 = vmatprep.subr.mxu0 0.0
    %1547 = vmatpush1.msra.mxu0 0.0
    %1548 = vmatprep.subr.mxu0 0.0
    %1549 = vmatpush1.msra.mxu0 0.0
    %1550 = vmatprep.subr.mxu0 0.0
    %1551 = vmatpush1.msra.mxu0 0.0
    %1552 = vmatprep.subr.mxu0 0.0
    %1553 = vmatpush1.msra.mxu0 0.0
    %1554 = vmatprep.subr.mxu0 0.0
    %1555 = vmatpush1.msra.mxu0 0.0
    %1556 = vmatprep.subr.mxu0 0.0
    %1557 = vmatpush1.msra.mxu0 0.0
    %1558 = vmatprep.subr.mxu0 0.0
    %1559 = vmatpush1.msra.mxu0 0.0
    %1560 = vmatprep.mubr.f32.mxu0 0.0
    %1561 = vmatmul.mubr.f32.gmra.mrb[0].mxu0 %v1424
    %v1562 = vpop.f32.mrb[0].mxu0
    %v1563 = vadd.f32 0.0, %v1562
    %v1564 = vpop.f32.mrb[0].mxu0
    %1565 = vdwg.mxu0
    %s1566 = scalar_lea.vmem [#allocation2], 32
    %v1567 = vld [vmem:[%s1566] sm:$0xff]
    %v1568 = vadd.f32 %v1567, %v1493
    %v1569 = vxor.u32 %v1568, 2147483648
    %v1570 = vmul.f32 %v1569, 1.442695
    %v1571 = vpow.pop %v1570
    %v1572 = vadd.f32 %v1571, 1.0
    %v1573 = vrcp.pop %v1572
    %v1574 = vmul.f32 1.0, %v1573
    %s1575 = scalar_lea.vmem [#allocation3], 32
    %v1576 = vld [vmem:[%s1575] sm:$0xff]
    %v1577 = vadd.f32 %v1576, %v1563
    %v1578 = vxor.u32 %v1577, 2147483648
    %v1579 = vmul.f32 %v1578, 1.442695
    %v1580 = vpow.pop %v1579
    %v1581 = vadd.f32 %v1580, 1.0
    %v1582 = vrcp.pop %v1581
    %v1583 = vmul.f32 1.0, %v1582
    %s1584 = scalar_lea.vmem [#allocation4], 32
    %v1585 = vld [vmem:[%s1584] sm:$0xff]
    %1586 = vmatprep.subr.mxu0 0.0
    %1587 = vmatpush1.msra.mxu0 %v451
    %1588 = vmatprep.subr.mxu0 0.0
    %1589 = vmatpush1.msra.mxu0 %v452
    %1590 = vmatprep.subr.mxu0 0.0
    %1591 = vmatpush1.msra.mxu0 %v453
    %1592 = vmatprep.subr.mxu0 0.0
    %1593 = vmatpush1.msra.mxu0 %v454
    %1594 = vmatprep.subr.mxu0 0.0
    %1595 = vmatpush1.msra.mxu0 0.0
    %1596 = vmatprep.subr.mxu0 0.0
    %1597 = vmatpush1.msra.mxu0 0.0
    %1598 = vmatprep.subr.mxu0 0.0
    %1599 = vmatpush1.msra.mxu0 0.0
    %1600 = vmatprep.subr.mxu0 0.0
    %1601 = vmatpush1.msra.mxu0 0.0
    %1602 = vmatprep.subr.mxu0 0.0
    %1603 = vmatpush1.msra.mxu0 0.0
    %1604 = vmatprep.subr.mxu0 0.0
    %1605 = vmatpush1.msra.mxu0 0.0
    %1606 = vmatprep.subr.mxu0 0.0
    %1607 = vmatpush1.msra.mxu0 0.0
    %1608 = vmatprep.subr.mxu0 0.0
    %1609 = vmatpush1.msra.mxu0 0.0
    %1610 = vmatprep.subr.mxu0 0.0
    %1611 = vmatpush1.msra.mxu0 0.0
    %1612 = vmatprep.subr.mxu0 0.0
    %1613 = vmatpush1.msra.mxu0 0.0
    %1614 = vmatprep.subr.mxu0 0.0
    %1615 = vmatpush1.msra.mxu0 0.0
    %1616 = vmatprep.subr.mxu0 0.0
    %1617 = vmatpush1.msra.mxu0 0.0
    %1618 = vmatprep.subr.mxu0 0.0
    %1619 = vmatpush1.msra.mxu0 0.0
    %1620 = vmatprep.subr.mxu0 0.0
    %1621 = vmatpush1.msra.mxu0 0.0
    %1622 = vmatprep.subr.mxu0 0.0
    %1623 = vmatpush1.msra.mxu0 0.0
    %1624 = vmatprep.subr.mxu0 0.0
    %1625 = vmatpush1.msra.mxu0 0.0
    %1626 = vmatprep.subr.mxu0 0.0
    %1627 = vmatpush1.msra.mxu0 0.0
    %1628 = vmatprep.subr.mxu0 0.0
    %1629 = vmatpush1.msra.mxu0 0.0
    %1630 = vmatprep.subr.mxu0 0.0
    %1631 = vmatpush1.msra.mxu0 0.0
    %1632 = vmatprep.subr.mxu0 0.0
    %1633 = vmatpush1.msra.mxu0 0.0
    %1634 = vmatprep.subr.mxu0 0.0
    %1635 = vmatpush1.msra.mxu0 0.0
    %1636 = vmatprep.subr.mxu0 0.0
    %1637 = vmatpush1.msra.mxu0 0.0
    %1638 = vmatprep.subr.mxu0 0.0
    %1639 = vmatpush1.msra.mxu0 0.0
    %1640 = vmatprep.subr.mxu0 0.0
    %1641 = vmatpush1.msra.mxu0 0.0
    %1642 = vmatprep.subr.mxu0 0.0
    %1643 = vmatpush1.msra.mxu0 0.0
    %1644 = vmatprep.subr.mxu0 0.0
    %1645 = vmatpush1.msra.mxu0 0.0
    %1646 = vmatprep.subr.mxu0 0.0
    %1647 = vmatpush1.msra.mxu0 0.0
    %1648 = vmatprep.subr.mxu0 0.0
    %1649 = vmatpush1.msra.mxu0 0.0
    %1650 = vmatprep.mubr.f32.mxu0 0.0
    %1651 = vmatmul.mubr.f32.gmra.mrb[0].mxu0 %v1424
    %v1652 = vpop.f32.mrb[0].mxu0
    %v1653 = vadd.f32 %v460, %v1652
    %v1654 = vpop.f32.mrb[0].mxu0
    %1655 = vdwg.mxu0
    %v1656 = vmul.f32 %v1574, %v1653
    %v1657 = vadd.f32 %v1585, %v1656
    %v1658 = vtanh.pop %v1657
    %v1659 = vsub.f32 %v1420, %v1658
    %v1660 = vmul.f32 %v1583, %v1659
    %v1661 = vadd.f32 %v1658, %v1660
    %s1662 = scalar_lea.vmem %s6, 32
    %1663 = vst.msk [vmem:[%s1662] sm:$0xff] %vm184, %v1661
    %v1665 = vsel %vm184, %v1661, 0
    %1667 = vmatprep.subr.mxu0 0.0
    %1668 = vmatpush1.msra.mxu0 %v441
    %1669 = vmatprep.subr.mxu0 0.0
    %1670 = vmatpush1.msra.mxu0 %v442
    %1671 = vmatprep.subr.mxu0 0.0
    %1672 = vmatpush1.msra.mxu0 %v443
    %1673 = vmatprep.subr.mxu0 0.0
    %1674 = vmatpush1.msra.mxu0 %v444
    %1675 = vmatprep.subr.mxu0 0.0
    %1676 = vmatpush1.msra.mxu0 0.0
    %1677 = vmatprep.subr.mxu0 0.0
    %1678 = vmatpush1.msra.mxu0 0.0
    %1679 = vmatprep.subr.mxu0 0.0
    %1680 = vmatpush1.msra.mxu0 0.0
    %1681 = vmatprep.subr.mxu0 0.0
    %1682 = vmatpush1.msra.mxu0 0.0
    %1683 = vmatprep.subr.mxu0 0.0
    %1684 = vmatpush1.msra.mxu0 0.0
    %1685 = vmatprep.subr.mxu0 0.0
    %1686 = vmatpush1.msra.mxu0 0.0
    %1687 = vmatprep.subr.mxu0 0.0
    %1688 = vmatpush1.msra.mxu0 0.0
    %1689 = vmatprep.subr.mxu0 0.0
    %1690 = vmatpush1.msra.mxu0 0.0
    %1691 = vmatprep.subr.mxu0 0.0
    %1692 = vmatpush1.msra.mxu0 0.0
    %1693 = vmatprep.subr.mxu0 0.0
    %1694 = vmatpush1.msra.mxu0 0.0
    %1695 = vmatprep.subr.mxu0 0.0
    %1696 = vmatpush1.msra.mxu0 0.0
    %1697 = vmatprep.subr.mxu0 0.0
    %1698 = vmatpush1.msra.mxu0 0.0
    %1699 = vmatprep.subr.mxu0 0.0
    %1700 = vmatpush1.msra.mxu0 0.0
    %1701 = vmatprep.subr.mxu0 0.0
    %1702 = vmatpush1.msra.mxu0 0.0
    %1703 = vmatprep.subr.mxu0 0.0
    %1704 = vmatpush1.msra.mxu0 0.0
    %1705 = vmatprep.subr.mxu0 0.0
    %1706 = vmatpush1.msra.mxu0 0.0
    %1707 = vmatprep.subr.mxu0 0.0
    %1708 = vmatpush1.msra.mxu0 0.0
    %1709 = vmatprep.subr.mxu0 0.0
    %1710 = vmatpush1.msra.mxu0 0.0
    %1711 = vmatprep.subr.mxu0 0.0
    %1712 = vmatpush1.msra.mxu0 0.0
    %1713 = vmatprep.subr.mxu0 0.0
    %1714 = vmatpush1.msra.mxu0 0.0
    %1715 = vmatprep.subr.mxu0 0.0
    %1716 = vmatpush1.msra.mxu0 0.0
    %1717 = vmatprep.subr.mxu0 0.0
    %1718 = vmatpush1.msra.mxu0 0.0
    %1719 = vmatprep.subr.mxu0 0.0
    %1720 = vmatpush1.msra.mxu0 0.0
    %1721 = vmatprep.subr.mxu0 0.0
    %1722 = vmatpush1.msra.mxu0 0.0
    %1723 = vmatprep.subr.mxu0 0.0
    %1724 = vmatpush1.msra.mxu0 0.0
    %1725 = vmatprep.subr.mxu0 0.0
    %1726 = vmatpush1.msra.mxu0 0.0
    %1727 = vmatprep.subr.mxu0 0.0
    %1728 = vmatpush1.msra.mxu0 0.0
    %1729 = vmatprep.subr.mxu0 0.0
    %1730 = vmatpush1.msra.mxu0 0.0
    %1731 = vmatprep.mubr.f32.mxu0 0.0
    %1732 = vmatmul.mubr.f32.gmra.mrb[0].mxu0 %v1665
    %v1733 = vpop.f32.mrb[0].mxu0
    %v1734 = vadd.f32 0.0, %v1733
    %v1735 = vpop.f32.mrb[0].mxu0
    %1736 = vdwg.mxu0
    %1737 = vmatprep.subr.mxu0 0.0
    %1738 = vmatpush1.msra.mxu0 %v446
    %1739 = vmatprep.subr.mxu0 0.0
    %1740 = vmatpush1.msra.mxu0 %v447
    %1741 = vmatprep.subr.mxu0 0.0
    %1742 = vmatpush1.msra.mxu0 %v448
    %1743 = vmatprep.subr.mxu0 0.0
    %1744 = vmatpush1.msra.mxu0 %v449
    %1745 = vmatprep.subr.mxu0 0.0
    %1746 = vmatpush1.msra.mxu0 0.0
    %1747 = vmatprep.subr.mxu0 0.0
    %1748 = vmatpush1.msra.mxu0 0.0
    %1749 = vmatprep.subr.mxu0 0.0
    %1750 = vmatpush1.msra.mxu0 0.0
    %1751 = vmatprep.subr.mxu0 0.0
    %1752 = vmatpush1.msra.mxu0 0.0
    %1753 = vmatprep.subr.mxu0 0.0
    %1754 = vmatpush1.msra.mxu0 0.0
    %1755 = vmatprep.subr.mxu0 0.0
    %1756 = vmatpush1.msra.mxu0 0.0
    %1757 = vmatprep.subr.mxu0 0.0
    %1758 = vmatpush1.msra.mxu0 0.0
    %1759 = vmatprep.subr.mxu0 0.0
    %1760 = vmatpush1.msra.mxu0 0.0
    %1761 = vmatprep.subr.mxu0 0.0
    %1762 = vmatpush1.msra.mxu0 0.0
    %1763 = vmatprep.subr.mxu0 0.0
    %1764 = vmatpush1.msra.mxu0 0.0
    %1765 = vmatprep.subr.mxu0 0.0
    %1766 = vmatpush1.msra.mxu0 0.0
    %1767 = vmatprep.subr.mxu0 0.0
    %1768 = vmatpush1.msra.mxu0 0.0
    %1769 = vmatprep.subr.mxu0 0.0
    %1770 = vmatpush1.msra.mxu0 0.0
    %1771 = vmatprep.subr.mxu0 0.0
    %1772 = vmatpush1.msra.mxu0 0.0
    %1773 = vmatprep.subr.mxu0 0.0
    %1774 = vmatpush1.msra.mxu0 0.0
    %1775 = vmatprep.subr.mxu0 0.0
    %1776 = vmatpush1.msra.mxu0 0.0
    %1777 = vmatprep.subr.mxu0 0.0
    %1778 = vmatpush1.msra.mxu0 0.0
    %1779 = vmatprep.subr.mxu0 0.0
    %1780 = vmatpush1.msra.mxu0 0.0
    %1781 = vmatprep.subr.mxu0 0.0
    %1782 = vmatpush1.msra.mxu0 0.0
    %1783 = vmatprep.subr.mxu0 0.0
    %1784 = vmatpush1.msra.mxu0 0.0
    %1785 = vmatprep.subr.mxu0 0.0
    %1786 = vmatpush1.msra.mxu0 0.0
    %1787 = vmatprep.subr.mxu0 0.0
    %1788 = vmatpush1.msra.mxu0 0.0
    %1789 = vmatprep.subr.mxu0 0.0
    %1790 = vmatpush1.msra.mxu0 0.0
    %1791 = vmatprep.subr.mxu0 0.0
    %1792 = vmatpush1.msra.mxu0 0.0
    %1793 = vmatprep.subr.mxu0 0.0
    %1794 = vmatpush1.msra.mxu0 0.0
    %1795 = vmatprep.subr.mxu0 0.0
    %1796 = vmatpush1.msra.mxu0 0.0
    %1797 = vmatprep.subr.mxu0 0.0
    %1798 = vmatpush1.msra.mxu0 0.0
    %1799 = vmatprep.subr.mxu0 0.0
    %1800 = vmatpush1.msra.mxu0 0.0
    %1801 = vmatprep.mubr.f32.mxu0 0.0
    %1802 = vmatmul.mubr.f32.gmra.mrb[0].mxu0 %v1665
    %v1803 = vpop.f32.mrb[0].mxu0
    %v1804 = vadd.f32 0.0, %v1803
    %v1805 = vpop.f32.mrb[0].mxu0
    %1806 = vdwg.mxu0
    %s1807 = scalar_lea.vmem [#allocation2], 40
    %v1808 = vld [vmem:[%s1807] sm:$0xff]
    %v1809 = vadd.f32 %v1808, %v1734
    %v1810 = vxor.u32 %v1809, 2147483648
    %v1811 = vmul.f32 %v1810, 1.442695
    %v1812 = vpow.pop %v1811
    %v1813 = vadd.f32 %v1812, 1.0
    %v1814 = vrcp.pop %v1813
    %v1815 = vmul.f32 1.0, %v1814
    %s1816 = scalar_lea.vmem [#allocation3], 40
    %v1817 = vld [vmem:[%s1816] sm:$0xff]
    %v1818 = vadd.f32 %v1817, %v1804
    %v1819 = vxor.u32 %v1818, 2147483648
    %v1820 = vmul.f32 %v1819, 1.442695
    %v1821 = vpow.pop %v1820
    %v1822 = vadd.f32 %v1821, 1.0
    %v1823 = vrcp.pop %v1822
    %v1824 = vmul.f32 1.0, %v1823
    %s1825 = scalar_lea.vmem [#allocation4], 40
    %v1826 = vld [vmem:[%s1825] sm:$0xff]
    %1827 = vmatprep.subr.mxu0 0.0
    %1828 = vmatpush1.msra.mxu0 %v451
    %1829 = vmatprep.subr.mxu0 0.0
    %1830 = vmatpush1.msra.mxu0 %v452
    %1831 = vmatprep.subr.mxu0 0.0
    %1832 = vmatpush1.msra.mxu0 %v453
    %1833 = vmatprep.subr.mxu0 0.0
    %1834 = vmatpush1.msra.mxu0 %v454
    %1835 = vmatprep.subr.mxu0 0.0
    %1836 = vmatpush1.msra.mxu0 0.0
    %1837 = vmatprep.subr.mxu0 0.0
    %1838 = vmatpush1.msra.mxu0 0.0
    %1839 = vmatprep.subr.mxu0 0.0
    %1840 = vmatpush1.msra.mxu0 0.0
    %1841 = vmatprep.subr.mxu0 0.0
    %1842 = vmatpush1.msra.mxu0 0.0
    %1843 = vmatprep.subr.mxu0 0.0
    %1844 = vmatpush1.msra.mxu0 0.0
    %1845 = vmatprep.subr.mxu0 0.0
    %1846 = vmatpush1.msra.mxu0 0.0
    %1847 = vmatprep.subr.mxu0 0.0
    %1848 = vmatpush1.msra.mxu0 0.0
    %1849 = vmatprep.subr.mxu0 0.0
    %1850 = vmatpush1.msra.mxu0 0.0
    %1851 = vmatprep.subr.mxu0 0.0
    %1852 = vmatpush1.msra.mxu0 0.0
    %1853 = vmatprep.subr.mxu0 0.0
    %1854 = vmatpush1.msra.mxu0 0.0
    %1855 = vmatprep.subr.mxu0 0.0
    %1856 = vmatpush1.msra.mxu0 0.0
    %1857 = vmatprep.subr.mxu0 0.0
    %1858 = vmatpush1.msra.mxu0 0.0
    %1859 = vmatprep.subr.mxu0 0.0
    %1860 = vmatpush1.msra.mxu0 0.0
    %1861 = vmatprep.subr.mxu0 0.0
    %1862 = vmatpush1.msra.mxu0 0.0
    %1863 = vmatprep.subr.mxu0 0.0
    %1864 = vmatpush1.msra.mxu0 0.0
    %1865 = vmatprep.subr.mxu0 0.0
    %1866 = vmatpush1.msra.mxu0 0.0
    %1867 = vmatprep.subr.mxu0 0.0
    %1868 = vmatpush1.msra.mxu0 0.0
    %1869 = vmatprep.subr.mxu0 0.0
    %1870 = vmatpush1.msra.mxu0 0.0
    %1871 = vmatprep.subr.mxu0 0.0
    %1872 = vmatpush1.msra.mxu0 0.0
    %1873 = vmatprep.subr.mxu0 0.0
    %1874 = vmatpush1.msra.mxu0 0.0
    %1875 = vmatprep.subr.mxu0 0.0
    %1876 = vmatpush1.msra.mxu0 0.0
    %1877 = vmatprep.subr.mxu0 0.0
    %1878 = vmatpush1.msra.mxu0 0.0
    %1879 = vmatprep.subr.mxu0 0.0
    %1880 = vmatpush1.msra.mxu0 0.0
    %1881 = vmatprep.subr.mxu0 0.0
    %1882 = vmatpush1.msra.mxu0 0.0
    %1883 = vmatprep.subr.mxu0 0.0
    %1884 = vmatpush1.msra.mxu0 0.0
    %1885 = vmatprep.subr.mxu0 0.0
    %1886 = vmatpush1.msra.mxu0 0.0
    %1887 = vmatprep.subr.mxu0 0.0
    %1888 = vmatpush1.msra.mxu0 0.0
    %1889 = vmatprep.subr.mxu0 0.0
    %1890 = vmatpush1.msra.mxu0 0.0
    %1891 = vmatprep.mubr.f32.mxu0 0.0
    %1892 = vmatmul.mubr.f32.gmra.mrb[0].mxu0 %v1665
    %v1893 = vpop.f32.mrb[0].mxu0
    %v1894 = vadd.f32 %v460, %v1893
    %v1895 = vpop.f32.mrb[0].mxu0
    %1896 = vdwg.mxu0
    %v1897 = vmul.f32 %v1815, %v1894
    %v1898 = vadd.f32 %v1826, %v1897
    %v1899 = vtanh.pop %v1898
    %v1900 = vsub.f32 %v1661, %v1899
    %v1901 = vmul.f32 %v1824, %v1900
    %v1902 = vadd.f32 %v1899, %v1901
    %s1903 = scalar_lea.vmem %s6, 40
    %1904 = vst.msk [vmem:[%s1903] sm:$0xff] %vm184, %v1902
    %v1906 = vsel %vm184, %v1902, 0
    %1908 = vmatprep.subr.mxu0 0.0
    %1909 = vmatpush1.msra.mxu0 %v441
    %1910 = vmatprep.subr.mxu0 0.0
    %1911 = vmatpush1.msra.mxu0 %v442
    %1912 = vmatprep.subr.mxu0 0.0
    %1913 = vmatpush1.msra.mxu0 %v443
    %1914 = vmatprep.subr.mxu0 0.0
    %1915 = vmatpush1.msra.mxu0 %v444
    %1916 = vmatprep.subr.mxu0 0.0
    %1917 = vmatpush1.msra.mxu0 0.0
    %1918 = vmatprep.subr.mxu0 0.0
    %1919 = vmatpush1.msra.mxu0 0.0
    %1920 = vmatprep.subr.mxu0 0.0
    %1921 = vmatpush1.msra.mxu0 0.0
    %1922 = vmatprep.subr.mxu0 0.0
    %1923 = vmatpush1.msra.mxu0 0.0
    %1924 = vmatprep.subr.mxu0 0.0
    %1925 = vmatpush1.msra.mxu0 0.0
    %1926 = vmatprep.subr.mxu0 0.0
    %1927 = vmatpush1.msra.mxu0 0.0
    %1928 = vmatprep.subr.mxu0 0.0
    %1929 = vmatpush1.msra.mxu0 0.0
    %1930 = vmatprep.subr.mxu0 0.0
    %1931 = vmatpush1.msra.mxu0 0.0
    %1932 = vmatprep.subr.mxu0 0.0
    %1933 = vmatpush1.msra.mxu0 0.0
    %1934 = vmatprep.subr.mxu0 0.0
    %1935 = vmatpush1.msra.mxu0 0.0
    %1936 = vmatprep.subr.mxu0 0.0
    %1937 = vmatpush1.msra.mxu0 0.0
    %1938 = vmatprep.subr.mxu0 0.0
    %1939 = vmatpush1.msra.mxu0 0.0
    %1940 = vmatprep.subr.mxu0 0.0
    %1941 = vmatpush1.msra.mxu0 0.0
    %1942 = vmatprep.subr.mxu0 0.0
    %1943 = vmatpush1.msra.mxu0 0.0
    %1944 = vmatprep.subr.mxu0 0.0
    %1945 = vmatpush1.msra.mxu0 0.0
    %1946 = vmatprep.subr.mxu0 0.0
    %1947 = vmatpush1.msra.mxu0 0.0
    %1948 = vmatprep.subr.mxu0 0.0
    %1949 = vmatpush1.msra.mxu0 0.0
    %1950 = vmatprep.subr.mxu0 0.0
    %1951 = vmatpush1.msra.mxu0 0.0
    %1952 = vmatprep.subr.mxu0 0.0
    %1953 = vmatpush1.msra.mxu0 0.0
    %1954 = vmatprep.subr.mxu0 0.0
    %1955 = vmatpush1.msra.mxu0 0.0
    %1956 = vmatprep.subr.mxu0 0.0
    %1957 = vmatpush1.msra.mxu0 0.0
    %1958 = vmatprep.subr.mxu0 0.0
    %1959 = vmatpush1.msra.mxu0 0.0
    %1960 = vmatprep.subr.mxu0 0.0
    %1961 = vmatpush1.msra.mxu0 0.0
    %1962 = vmatprep.subr.mxu0 0.0
    %1963 = vmatpush1.msra.mxu0 0.0
    %1964 = vmatprep.subr.mxu0 0.0
    %1965 = vmatpush1.msra.mxu0 0.0
    %1966 = vmatprep.subr.mxu0 0.0
    %1967 = vmatpush1.msra.mxu0 0.0
    %1968 = vmatprep.subr.mxu0 0.0
    %1969 = vmatpush1.msra.mxu0 0.0
    %1970 = vmatprep.subr.mxu0 0.0
    %1971 = vmatpush1.msra.mxu0 0.0
    %1972 = vmatprep.mubr.f32.mxu0 0.0
    %1973 = vmatmul.mubr.f32.gmra.mrb[0].mxu0 %v1906
    %v1974 = vpop.f32.mrb[0].mxu0
    %v1975 = vadd.f32 0.0, %v1974
    %v1976 = vpop.f32.mrb[0].mxu0
    %1977 = vdwg.mxu0
    %1978 = vmatprep.subr.mxu0 0.0
    %1979 = vmatpush1.msra.mxu0 %v446
    %1980 = vmatprep.subr.mxu0 0.0
    %1981 = vmatpush1.msra.mxu0 %v447
    %1982 = vmatprep.subr.mxu0 0.0
    %1983 = vmatpush1.msra.mxu0 %v448
    %1984 = vmatprep.subr.mxu0 0.0
    %1985 = vmatpush1.msra.mxu0 %v449
    %1986 = vmatprep.subr.mxu0 0.0
    %1987 = vmatpush1.msra.mxu0 0.0
    %1988 = vmatprep.subr.mxu0 0.0
    %1989 = vmatpush1.msra.mxu0 0.0
    %1990 = vmatprep.subr.mxu0 0.0
    %1991 = vmatpush1.msra.mxu0 0.0
    %1992 = vmatprep.subr.mxu0 0.0
    %1993 = vmatpush1.msra.mxu0 0.0
    %1994 = vmatprep.subr.mxu0 0.0
    %1995 = vmatpush1.msra.mxu0 0.0
    %1996 = vmatprep.subr.mxu0 0.0
    %1997 = vmatpush1.msra.mxu0 0.0
    %1998 = vmatprep.subr.mxu0 0.0
    %1999 = vmatpush1.msra.mxu0 0.0
    %2000 = vmatprep.subr.mxu0 0.0
    %2001 = vmatpush1.msra.mxu0 0.0
    %2002 = vmatprep.subr.mxu0 0.0
    %2003 = vmatpush1.msra.mxu0 0.0
    %2004 = vmatprep.subr.mxu0 0.0
    %2005 = vmatpush1.msra.mxu0 0.0
    %2006 = vmatprep.subr.mxu0 0.0
    %2007 = vmatpush1.msra.mxu0 0.0
    %2008 = vmatprep.subr.mxu0 0.0
    %2009 = vmatpush1.msra.mxu0 0.0
    %2010 = vmatprep.subr.mxu0 0.0
    %2011 = vmatpush1.msra.mxu0 0.0
    %2012 = vmatprep.subr.mxu0 0.0
    %2013 = vmatpush1.msra.mxu0 0.0
    %2014 = vmatprep.subr.mxu0 0.0
    %2015 = vmatpush1.msra.mxu0 0.0
    %2016 = vmatprep.subr.mxu0 0.0
    %2017 = vmatpush1.msra.mxu0 0.0
    %2018 = vmatprep.subr.mxu0 0.0
    %2019 = vmatpush1.msra.mxu0 0.0
    %2020 = vmatprep.subr.mxu0 0.0
    %2021 = vmatpush1.msra.mxu0 0.0
    %2022 = vmatprep.subr.mxu0 0.0
    %2023 = vmatpush1.msra.mxu0 0.0
    %2024 = vmatprep.subr.mxu0 0.0
    %2025 = vmatpush1.msra.mxu0 0.0
    %2026 = vmatprep.subr.mxu0 0.0
    %2027 = vmatpush1.msra.mxu0 0.0
    %2028 = vmatprep.subr.mxu0 0.0
    %2029 = vmatpush1.msra.mxu0 0.0
    %2030 = vmatprep.subr.mxu0 0.0
    %2031 = vmatpush1.msra.mxu0 0.0
    %2032 = vmatprep.subr.mxu0 0.0
    %2033 = vmatpush1.msra.mxu0 0.0
    %2034 = vmatprep.subr.mxu0 0.0
    %2035 = vmatpush1.msra.mxu0 0.0
    %2036 = vmatprep.subr.mxu0 0.0
    %2037 = vmatpush1.msra.mxu0 0.0
    %2038 = vmatprep.subr.mxu0 0.0
    %2039 = vmatpush1.msra.mxu0 0.0
    %2040 = vmatprep.subr.mxu0 0.0
    %2041 = vmatpush1.msra.mxu0 0.0
    %2042 = vmatprep.mubr.f32.mxu0 0.0
    %2043 = vmatmul.mubr.f32.gmra.mrb[0].mxu0 %v1906
    %v2044 = vpop.f32.mrb[0].mxu0
    %v2045 = vadd.f32 0.0, %v2044
    %v2046 = vpop.f32.mrb[0].mxu0
    %2047 = vdwg.mxu0
    %s2048 = scalar_lea.vmem [#allocation2], 48
    %v2049 = vld [vmem:[%s2048] sm:$0xff]
    %v2050 = vadd.f32 %v2049, %v1975
    %v2051 = vxor.u32 %v2050, 2147483648
    %v2052 = vmul.f32 %v2051, 1.442695
    %v2053 = vpow.pop %v2052
    %v2054 = vadd.f32 %v2053, 1.0
    %v2055 = vrcp.pop %v2054
    %v2056 = vmul.f32 1.0, %v2055
    %s2057 = scalar_lea.vmem [#allocation3], 48
    %v2058 = vld [vmem:[%s2057] sm:$0xff]
    %v2059 = vadd.f32 %v2058, %v2045
    %v2060 = vxor.u32 %v2059, 2147483648
    %v2061 = vmul.f32 %v2060, 1.442695
    %v2062 = vpow.pop %v2061
    %v2063 = vadd.f32 %v2062, 1.0
    %v2064 = vrcp.pop %v2063
    %v2065 = vmul.f32 1.0, %v2064
    %s2066 = scalar_lea.vmem [#allocation4], 48
    %v2067 = vld [vmem:[%s2066] sm:$0xff]
    %2068 = vmatprep.subr.mxu0 0.0
    %2069 = vmatpush1.msra.mxu0 %v451
    %2070 = vmatprep.subr.mxu0 0.0
    %2071 = vmatpush1.msra.mxu0 %v452
    %2072 = vmatprep.subr.mxu0 0.0
    %2073 = vmatpush1.msra.mxu0 %v453
    %2074 = vmatprep.subr.mxu0 0.0
    %2075 = vmatpush1.msra.mxu0 %v454
    %2076 = vmatprep.subr.mxu0 0.0
    %2077 = vmatpush1.msra.mxu0 0.0
    %2078 = vmatprep.subr.mxu0 0.0
    %2079 = vmatpush1.msra.mxu0 0.0
    %2080 = vmatprep.subr.mxu0 0.0
    %2081 = vmatpush1.msra.mxu0 0.0
    %2082 = vmatprep.subr.mxu0 0.0
    %2083 = vmatpush1.msra.mxu0 0.0
    %2084 = vmatprep.subr.mxu0 0.0
    %2085 = vmatpush1.msra.mxu0 0.0
    %2086 = vmatprep.subr.mxu0 0.0
    %2087 = vmatpush1.msra.mxu0 0.0
    %2088 = vmatprep.subr.mxu0 0.0
    %2089 = vmatpush1.msra.mxu0 0.0
    %2090 = vmatprep.subr.mxu0 0.0
    %2091 = vmatpush1.msra.mxu0 0.0
    %2092 = vmatprep.subr.mxu0 0.0
    %2093 = vmatpush1.msra.mxu0 0.0
    %2094 = vmatprep.subr.mxu0 0.0
    %2095 = vmatpush1.msra.mxu0 0.0
    %2096 = vmatprep.subr.mxu0 0.0
    %2097 = vmatpush1.msra.mxu0 0.0
    %2098 = vmatprep.subr.mxu0 0.0
    %2099 = vmatpush1.msra.mxu0 0.0
    %2100 = vmatprep.subr.mxu0 0.0
    %2101 = vmatpush1.msra.mxu0 0.0
    %2102 = vmatprep.subr.mxu0 0.0
    %2103 = vmatpush1.msra.mxu0 0.0
    %2104 = vmatprep.subr.mxu0 0.0
    %2105 = vmatpush1.msra.mxu0 0.0
    %2106 = vmatprep.subr.mxu0 0.0
    %2107 = vmatpush1.msra.mxu0 0.0
    %2108 = vmatprep.subr.mxu0 0.0
    %2109 = vmatpush1.msra.mxu0 0.0
    %2110 = vmatprep.subr.mxu0 0.0
    %2111 = vmatpush1.msra.mxu0 0.0
    %2112 = vmatprep.subr.mxu0 0.0
    %2113 = vmatpush1.msra.mxu0 0.0
    %2114 = vmatprep.subr.mxu0 0.0
    %2115 = vmatpush1.msra.mxu0 0.0
    %2116 = vmatprep.subr.mxu0 0.0
    %2117 = vmatpush1.msra.mxu0 0.0
    %2118 = vmatprep.subr.mxu0 0.0
    %2119 = vmatpush1.msra.mxu0 0.0
    %2120 = vmatprep.subr.mxu0 0.0
    %2121 = vmatpush1.msra.mxu0 0.0
    %2122 = vmatprep.subr.mxu0 0.0
    %2123 = vmatpush1.msra.mxu0 0.0
    %2124 = vmatprep.subr.mxu0 0.0
    %2125 = vmatpush1.msra.mxu0 0.0
    %2126 = vmatprep.subr.mxu0 0.0
    %2127 = vmatpush1.msra.mxu0 0.0
    %2128 = vmatprep.subr.mxu0 0.0
    %2129 = vmatpush1.msra.mxu0 0.0
    %2130 = vmatprep.subr.mxu0 0.0
    %2131 = vmatpush1.msra.mxu0 0.0
    %2132 = vmatprep.mubr.f32.mxu0 0.0
    %2133 = vmatmul.mubr.f32.gmra.mrb[0].mxu0 %v1906
    %v2134 = vpop.f32.mrb[0].mxu0
    %v2135 = vadd.f32 %v460, %v2134
    %v2136 = vpop.f32.mrb[0].mxu0
    %2137 = vdwg.mxu0
    %v2138 = vmul.f32 %v2056, %v2135
    %v2139 = vadd.f32 %v2067, %v2138
    %v2140 = vtanh.pop %v2139
    %v2141 = vsub.f32 %v1902, %v2140
    %v2142 = vmul.f32 %v2065, %v2141
    %v2143 = vadd.f32 %v2140, %v2142
    %s2144 = scalar_lea.vmem %s6, 48
    %2145 = vst.msk [vmem:[%s2144] sm:$0xff] %vm184, %v2143
    %v2147 = vsel %vm184, %v2143, 0
    %2149 = vmatprep.subr.mxu0 0.0
    %2150 = vmatpush1.msra.mxu0 %v441
    %2151 = vmatprep.subr.mxu0 0.0
    %2152 = vmatpush1.msra.mxu0 %v442
    %2153 = vmatprep.subr.mxu0 0.0
    %2154 = vmatpush1.msra.mxu0 %v443
    %2155 = vmatprep.subr.mxu0 0.0
    %2156 = vmatpush1.msra.mxu0 %v444
    %2157 = vmatprep.subr.mxu0 0.0
    %2158 = vmatpush1.msra.mxu0 0.0
    %2159 = vmatprep.subr.mxu0 0.0
    %2160 = vmatpush1.msra.mxu0 0.0
    %2161 = vmatprep.subr.mxu0 0.0
    %2162 = vmatpush1.msra.mxu0 0.0
    %2163 = vmatprep.subr.mxu0 0.0
    %2164 = vmatpush1.msra.mxu0 0.0
    %2165 = vmatprep.subr.mxu0 0.0
    %2166 = vmatpush1.msra.mxu0 0.0
    %2167 = vmatprep.subr.mxu0 0.0
    %2168 = vmatpush1.msra.mxu0 0.0
    %2169 = vmatprep.subr.mxu0 0.0
    %2170 = vmatpush1.msra.mxu0 0.0
    %2171 = vmatprep.subr.mxu0 0.0
    %2172 = vmatpush1.msra.mxu0 0.0
    %2173 = vmatprep.subr.mxu0 0.0
    %2174 = vmatpush1.msra.mxu0 0.0
    %2175 = vmatprep.subr.mxu0 0.0
    %2176 = vmatpush1.msra.mxu0 0.0
    %2177 = vmatprep.subr.mxu0 0.0
    %2178 = vmatpush1.msra.mxu0 0.0
    %2179 = vmatprep.subr.mxu0 0.0
    %2180 = vmatpush1.msra.mxu0 0.0
    %2181 = vmatprep.subr.mxu0 0.0
    %2182 = vmatpush1.msra.mxu0 0.0
    %2183 = vmatprep.subr.mxu0 0.0
    %2184 = vmatpush1.msra.mxu0 0.0
    %2185 = vmatprep.subr.mxu0 0.0
    %2186 = vmatpush1.msra.mxu0 0.0
    %2187 = vmatprep.subr.mxu0 0.0
    %2188 = vmatpush1.msra.mxu0 0.0
    %2189 = vmatprep.subr.mxu0 0.0
    %2190 = vmatpush1.msra.mxu0 0.0
    %2191 = vmatprep.subr.mxu0 0.0
    %2192 = vmatpush1.msra.mxu0 0.0
    %2193 = vmatprep.subr.mxu0 0.0
    %2194 = vmatpush1.msra.mxu0 0.0
    %2195 = vmatprep.subr.mxu0 0.0
    %2196 = vmatpush1.msra.mxu0 0.0
    %2197 = vmatprep.subr.mxu0 0.0
    %2198 = vmatpush1.msra.mxu0 0.0
    %2199 = vmatprep.subr.mxu0 0.0
    %2200 = vmatpush1.msra.mxu0 0.0
    %2201 = vmatprep.subr.mxu0 0.0
    %2202 = vmatpush1.msra.mxu0 0.0
    %2203 = vmatprep.subr.mxu0 0.0
    %2204 = vmatpush1.msra.mxu0 0.0
    %2205 = vmatprep.subr.mxu0 0.0
    %2206 = vmatpush1.msra.mxu0 0.0
    %2207 = vmatprep.subr.mxu0 0.0
    %2208 = vmatpush1.msra.mxu0 0.0
    %2209 = vmatprep.subr.mxu0 0.0
    %2210 = vmatpush1.msra.mxu0 0.0
    %2211 = vmatprep.subr.mxu0 0.0
    %2212 = vmatpush1.msra.mxu0 0.0
    %2213 = vmatprep.mubr.f32.mxu0 0.0
    %2214 = vmatmul.mubr.f32.gmra.mrb[0].mxu0 %v2147
    %v2215 = vpop.f32.mrb[0].mxu0
    %v2216 = vadd.f32 0.0, %v2215
    %v2217 = vpop.f32.mrb[0].mxu0
    %2218 = vdwg.mxu0
    %2219 = vmatprep.subr.mxu0 0.0
    %2220 = vmatpush1.msra.mxu0 %v446
    %2221 = vmatprep.subr.mxu0 0.0
    %2222 = vmatpush1.msra.mxu0 %v447
    %2223 = vmatprep.subr.mxu0 0.0
    %2224 = vmatpush1.msra.mxu0 %v448
    %2225 = vmatprep.subr.mxu0 0.0
    %2226 = vmatpush1.msra.mxu0 %v449
    %2227 = vmatprep.subr.mxu0 0.0
    %2228 = vmatpush1.msra.mxu0 0.0
    %2229 = vmatprep.subr.mxu0 0.0
    %2230 = vmatpush1.msra.mxu0 0.0
    %2231 = vmatprep.subr.mxu0 0.0
    %2232 = vmatpush1.msra.mxu0 0.0
    %2233 = vmatprep.subr.mxu0 0.0
    %2234 = vmatpush1.msra.mxu0 0.0
    %2235 = vmatprep.subr.mxu0 0.0
    %2236 = vmatpush1.msra.mxu0 0.0
    %2237 = vmatprep.subr.mxu0 0.0
    %2238 = vmatpush1.msra.mxu0 0.0
    %2239 = vmatprep.subr.mxu0 0.0
    %2240 = vmatpush1.msra.mxu0 0.0
    %2241 = vmatprep.subr.mxu0 0.0
    %2242 = vmatpush1.msra.mxu0 0.0
    %2243 = vmatprep.subr.mxu0 0.0
    %2244 = vmatpush1.msra.mxu0 0.0
    %2245 = vmatprep.subr.mxu0 0.0
    %2246 = vmatpush1.msra.mxu0 0.0
    %2247 = vmatprep.subr.mxu0 0.0
    %2248 = vmatpush1.msra.mxu0 0.0
    %2249 = vmatprep.subr.mxu0 0.0
    %2250 = vmatpush1.msra.mxu0 0.0
    %2251 = vmatprep.subr.mxu0 0.0
    %2252 = vmatpush1.msra.mxu0 0.0
    %2253 = vmatprep.subr.mxu0 0.0
    %2254 = vmatpush1.msra.mxu0 0.0
    %2255 = vmatprep.subr.mxu0 0.0
    %2256 = vmatpush1.msra.mxu0 0.0
    %2257 = vmatprep.subr.mxu0 0.0
    %2258 = vmatpush1.msra.mxu0 0.0
    %2259 = vmatprep.subr.mxu0 0.0
    %2260 = vmatpush1.msra.mxu0 0.0
    %2261 = vmatprep.subr.mxu0 0.0
    %2262 = vmatpush1.msra.mxu0 0.0
    %2263 = vmatprep.subr.mxu0 0.0
    %2264 = vmatpush1.msra.mxu0 0.0
    %2265 = vmatprep.subr.mxu0 0.0
    %2266 = vmatpush1.msra.mxu0 0.0
    %2267 = vmatprep.subr.mxu0 0.0
    %2268 = vmatpush1.msra.mxu0 0.0
    %2269 = vmatprep.subr.mxu0 0.0
    %2270 = vmatpush1.msra.mxu0 0.0
    %2271 = vmatprep.subr.mxu0 0.0
    %2272 = vmatpush1.msra.mxu0 0.0
    %2273 = vmatprep.subr.mxu0 0.0
    %2274 = vmatpush1.msra.mxu0 0.0
    %2275 = vmatprep.subr.mxu0 0.0
    %2276 = vmatpush1.msra.mxu0 0.0
    %2277 = vmatprep.subr.mxu0 0.0
    %2278 = vmatpush1.msra.mxu0 0.0
    %2279 = vmatprep.subr.mxu0 0.0
    %2280 = vmatpush1.msra.mxu0 0.0
    %2281 = vmatprep.subr.mxu0 0.0
    %2282 = vmatpush1.msra.mxu0 0.0
    %2283 = vmatprep.mubr.f32.mxu0 0.0
    %2284 = vmatmul.mubr.f32.gmra.mrb[0].mxu0 %v2147
    %v2285 = vpop.f32.mrb[0].mxu0
    %v2286 = vadd.f32 0.0, %v2285
    %v2287 = vpop.f32.mrb[0].mxu0
    %2288 = vdwg.mxu0
    %s2289 = scalar_lea.vmem [#allocation2], 56
    %v2290 = vld [vmem:[%s2289] sm:$0xff]
    %v2291 = vadd.f32 %v2290, %v2216
    %v2292 = vxor.u32 %v2291, 2147483648
    %v2293 = vmul.f32 %v2292, 1.442695
    %v2294 = vpow.pop %v2293
    %v2295 = vadd.f32 %v2294, 1.0
    %v2296 = vrcp.pop %v2295
    %v2297 = vmul.f32 1.0, %v2296
    %s2298 = scalar_lea.vmem [#allocation3], 56
    %v2299 = vld [vmem:[%s2298] sm:$0xff]
    %v2300 = vadd.f32 %v2299, %v2286
    %v2301 = vxor.u32 %v2300, 2147483648
    %v2302 = vmul.f32 %v2301, 1.442695
    %v2303 = vpow.pop %v2302
    %v2304 = vadd.f32 %v2303, 1.0
    %v2305 = vrcp.pop %v2304
    %v2306 = vmul.f32 1.0, %v2305
    %s2307 = scalar_lea.vmem [#allocation4], 56
    %v2308 = vld [vmem:[%s2307] sm:$0xff]
    %2309 = vmatprep.subr.mxu0 0.0
    %2310 = vmatpush1.msra.mxu0 %v451
    %2311 = vmatprep.subr.mxu0 0.0
    %2312 = vmatpush1.msra.mxu0 %v452
    %2313 = vmatprep.subr.mxu0 0.0
    %2314 = vmatpush1.msra.mxu0 %v453
    %2315 = vmatprep.subr.mxu0 0.0
    %2316 = vmatpush1.msra.mxu0 %v454
    %2317 = vmatprep.subr.mxu0 0.0
    %2318 = vmatpush1.msra.mxu0 0.0
    %2319 = vmatprep.subr.mxu0 0.0
    %2320 = vmatpush1.msra.mxu0 0.0
    %2321 = vmatprep.subr.mxu0 0.0
    %2322 = vmatpush1.msra.mxu0 0.0
    %2323 = vmatprep.subr.mxu0 0.0
    %2324 = vmatpush1.msra.mxu0 0.0
    %2325 = vmatprep.subr.mxu0 0.0
    %2326 = vmatpush1.msra.mxu0 0.0
    %2327 = vmatprep.subr.mxu0 0.0
    %2328 = vmatpush1.msra.mxu0 0.0
    %2329 = vmatprep.subr.mxu0 0.0
    %2330 = vmatpush1.msra.mxu0 0.0
    %2331 = vmatprep.subr.mxu0 0.0
    %2332 = vmatpush1.msra.mxu0 0.0
    %2333 = vmatprep.subr.mxu0 0.0
    %2334 = vmatpush1.msra.mxu0 0.0
    %2335 = vmatprep.subr.mxu0 0.0
    %2336 = vmatpush1.msra.mxu0 0.0
    %2337 = vmatprep.subr.mxu0 0.0
    %2338 = vmatpush1.msra.mxu0 0.0
    %2339 = vmatprep.subr.mxu0 0.0
    %2340 = vmatpush1.msra.mxu0 0.0
    %2341 = vmatprep.subr.mxu0 0.0
    %2342 = vmatpush1.msra.mxu0 0.0
    %2343 = vmatprep.subr.mxu0 0.0
    %2344 = vmatpush1.msra.mxu0 0.0
    %2345 = vmatprep.subr.mxu0 0.0
    %2346 = vmatpush1.msra.mxu0 0.0
    %2347 = vmatprep.subr.mxu0 0.0
    %2348 = vmatpush1.msra.mxu0 0.0
    %2349 = vmatprep.subr.mxu0 0.0
    %2350 = vmatpush1.msra.mxu0 0.0
    %2351 = vmatprep.subr.mxu0 0.0
    %2352 = vmatpush1.msra.mxu0 0.0
    %2353 = vmatprep.subr.mxu0 0.0
    %2354 = vmatpush1.msra.mxu0 0.0
    %2355 = vmatprep.subr.mxu0 0.0
    %2356 = vmatpush1.msra.mxu0 0.0
    %2357 = vmatprep.subr.mxu0 0.0
    %2358 = vmatpush1.msra.mxu0 0.0
    %2359 = vmatprep.subr.mxu0 0.0
    %2360 = vmatpush1.msra.mxu0 0.0
    %2361 = vmatprep.subr.mxu0 0.0
    %2362 = vmatpush1.msra.mxu0 0.0
    %2363 = vmatprep.subr.mxu0 0.0
    %2364 = vmatpush1.msra.mxu0 0.0
    %2365 = vmatprep.subr.mxu0 0.0
    %2366 = vmatpush1.msra.mxu0 0.0
    %2367 = vmatprep.subr.mxu0 0.0
    %2368 = vmatpush1.msra.mxu0 0.0
    %2369 = vmatprep.subr.mxu0 0.0
    %2370 = vmatpush1.msra.mxu0 0.0
    %2371 = vmatprep.subr.mxu0 0.0
    %2372 = vmatpush1.msra.mxu0 0.0
    %2373 = vmatprep.mubr.f32.mxu0 0.0
    %2374 = vmatmul.mubr.f32.gmra.mrb[0].mxu0 %v2147
    %v2375 = vpop.f32.mrb[0].mxu0
    %v2376 = vadd.f32 %v460, %v2375
    %v2377 = vpop.f32.mrb[0].mxu0
    %2378 = vdwg.mxu0
    %v2379 = vmul.f32 %v2297, %v2376
    %v2380 = vadd.f32 %v2308, %v2379
    %v2381 = vtanh.pop %v2380
    %v2382 = vsub.f32 %v2143, %v2381
    %v2383 = vmul.f32 %v2306, %v2382
    %v2384 = vadd.f32 %v2381, %v2383
    %s2385 = scalar_lea.vmem %s6, 56
    %2386 = vst.msk [vmem:[%s2385] sm:$0xff] %vm184, %v2384
    // Predicated region
    $region30: #{tpu_custom_call.1} parent=1 // pred_check
      _
    $region31: #{tpu_custom_call.1} parent=1 // pred_check_branch
      %2388 = sbr.rel (0) target = $region33
    $region32: #{tpu_custom_call.1} parent=1 // pred_region
      _
    $region33: #{tpu_custom_call.1} parent=1 // pred_fallthru
      _
    // Predicated region
    $region34: #{tpu_custom_call.1} parent=1 // pred_check
      _
    $region35: #{tpu_custom_call.1} parent=1 // pred_check_branch
      %2390 = sbr.rel (0) target = $region37
    $region36: #{tpu_custom_call.1} parent=1 // pred_region
      _
    $region37: #{tpu_custom_call.1} parent=1 // pred_fallthru
      _
    %2391 = vsyncpa [#allocation6], 1

</llo_original>
